<compile_context>
chip_gen: v6e
topology: v6e:2x2x1
jax: 0.10.0
libtpu: 0.0.40
codegen_flags: <defaults>
</compile_context>

<pallas_src>
from functools import partial

import jax
import jax.numpy as jnp
from jax.experimental import pallas as pl
from jax.experimental.pallas import tpu as pltpu

# bfloat16 MXU operands with float32 accumulation (set to jnp.float32 for exact-f32 math).
MXU_DTYPE = jnp.bfloat16


# ----------------------------- shared helpers ---------------------------------

def _layernorm(x, g, b, eps=1e-5):
    mu = jnp.mean(x, axis=-1, keepdims=True)
    var = jnp.mean(jnp.square(x - mu), axis=-1, keepdims=True)
    return (x - mu) * jax.lax.rsqrt(var + eps) * g + b


def _const_spec(a):
    """Whole-array block, same block for every grid step (weights / biases)."""
    return pl.BlockSpec(a.shape, lambda i, _n=a.ndim: (0,) * _n)


def _images_per_step(batch, tokens_per_image, in_feat, dim, hidden, num_heads, t,
                     vmem_budget_bytes=8 << 20):
    """Images per grid step: as many as a conservative VMEM budget allows, but keep the
    (parallel) grid at >= 2 steps when batch >= 2 so both v7x TensorCores get work."""
    # Rough live bytes / token: f32 intermediates, bf16 matmul copies, per-head scores.
    per_token = 4 * (in_feat + 12 * dim + 2 * hidden + num_heads * t)
    max_by_vmem = max(1, vmem_budget_bytes // max(1, per_token * tokens_per_image))
    target = max(1, min(batch, max_by_vmem))
    if batch >= 2:
        target = max(1, min(target, batch // 2))
    for cand in range(target, 0, -1):          # largest divisor of batch <= target
        if batch % cand == 0:
            return cand
    return 1


# ----------------------------- kernel ------------------------------------------

def _swin_block_kernel(num_heads, window_t, tokens_per_image,
                       p_ref, pew_ref, peb_ref, ln1g_ref, ln1b_ref,
                       qkvw_ref, qkvb_ref, bias_ref,
                       pw_ref, pb_ref, ln2g_ref, ln2b_ref,
                       w1_ref, b1_ref, w2_ref, b2_ref, lnfg_ref, lnfb_ref,
                       feat_ref, pool_ref):
    """Full Swin block for one row block of whole images (rows are in window order,
    so attention windows are contiguous groups of `window_t` rows)."""
    rows = p_ref.shape[0]
    d = pew_ref.shape[1]
    t = window_t
    hd = d // num_heads

    # 1) patch embedding (Conv2d k=stride=patch as one big matmul).
    x0 = jnp.dot(p_ref[...], pew_ref[...], preferred_element_type=jnp.float32) + peb_ref[...]

    # 2) LN1 + fused QKV projection (attention scale is folded into the Q columns/bias).
    xn = _layernorm(x0, ln1g_ref[...], ln1b_ref[...]).astype(MXU_DTYPE)
    qkv = jnp.dot(xn, qkvw_ref[...], preferred_element_type=jnp.float32) + qkvb_ref[...]

    nwin = rows // t
    q = qkv[:, :d].astype(MXU_DTYPE).reshape(nwin, t, d)
    k = qkv[:, d:2 * d].astype(MXU_DTYPE).reshape(nwin, t, d)
    v = qkv[:, 2 * d:].astype(MXU_DTYPE).reshape(nwin, t, d)

    # 3) windowed MHSA (scores / softmax / PV), window-batched einsums, heads unrolled.
    heads = []
    for h in range(num_heads):                        # static unroll (num_heads small)
        sl = slice(h * hd, (h + 1) * hd)
        s = jnp.einsum('bqd,bkd->bqk', q[:, :, sl], k[:, :, sl],
                       preferred_element_type=jnp.float32)
        s = s + bias_ref[h]                           # relative position bias (T, T)
        s = s - jnp.max(s, axis=-1, keepdims=True)
        p = jnp.exp(s)
        p = p * pl.reciprocal(jnp.sum(p, axis=-1, keepdims=True), approx=True)
        heads.append(jnp.einsum('bqk,bkd->bqd', p.astype(MXU_DTYPE), v[:, :, sl],
                                preferred_element_type=jnp.float32))
    attn = jnp.concatenate(heads, axis=-1).reshape(rows, d).astype(MXU_DTYPE)

    # 4) attention projection + residual, LN2 + MLP(GELU) + residual.
    y = x0 + jnp.dot(attn, pw_ref[...], preferred_element_type=jnp.float32) + pb_ref[...]
    hn = _layernorm(y, ln2g_ref[...], ln2b_ref[...]).astype(MXU_DTYPE)
    # TODO(synk): PyTorch nn.GELU defaults to the exact erf form; tanh approximation is
    # used here for Mosaic lowering safety (matches to ~1e-3).
    h1 = jax.nn.gelu(jnp.dot(hn, w1_ref[...], preferred_element_type=jnp.float32) + b1_ref[...],
                     approximate=True).astype(MXU_DTYPE)
    z = y + jnp.dot(h1, w2_ref[...], preferred_element_type=jnp.float32) + b2_ref[...]

    # 5) final LayerNorm + per-image AdaptiveAvgPool1d(1).
    f = _layernorm(z, lnfg_ref[...], lnfb_ref[...])
    feat_ref[...] = f.astype(feat_ref.dtype)
    ib = rows // tokens_per_image
    pool_ref[...] = jnp.mean(f.reshape(ib, tokens_per_image, d), axis=1,
                             keepdims=True).astype(pool_ref.dtype)


# ----------------------------- wrapper ------------------------------------------

def swin_vision_forward(x, params, *, patch=4, window=4, num_heads=2):
    """x: NCHW float32 image batch -> (features [B, N, D] spatial order, pooled [B, 1, D])."""
    B, C, H, W = x.shape
    nH, nW = H // patch, W // patch
    assert nH % window == 0 and nW % window == 0
    wh, ww = nH // window, nW // window
    N = nH * nW
    T = window * window
    M = B * N
    D = params['patch_w'].shape[1]
    hidden = params['fc1_w'].shape[1]
    Cpp = C * patch * patch
    hd = D // num_heads
    assert N % 8 == 0

    # Fold the 1/sqrt(head_dim) score scale into Q, fuse Q/K/V into one (D, 3D) weight,
    # cast all MXU weights to bf16 once.
    scale = 1.0 / float(hd) ** 0.5
    qkv_w = jnp.concatenate([params['q_w'] * scale, params['k_w'], params['v_w']],
                            axis=1).astype(MXU_DTYPE)
    qkv_b = jnp.concatenate([params['q_b'] * scale, params['k_b'], params['v_b']], axis=1)
    pew = params['patch_w'].astype(MXU_DTYPE)
    pw = params['proj_w'].astype(MXU_DTYPE)
    w1 = params['fc1_w'].astype(MXU_DTYPE)
    w2 = params['fc2_w'].astype(MXU_DTYPE)

    # Extract non-overlapping (patch x patch) patches directly in Swin WINDOW order:
    # (B, C, H, W) -> (M, C*P*P); per-token features flattened as (C, ph, pw) to match
    # the Conv2d-style patch_w layout.  Cast to bf16 so the kernel input DMA is halved.
    xp = x.reshape(B, C, wh, window, patch, ww, window, patch)
    xp = xp.transpose(0, 2, 5, 3, 6, 1, 4, 7).reshape(M, Cpp).astype(MXU_DTYPE)

    ib = _images_per_step(B, N, Cpp, D, hidden, num_heads, T)
    rows = ib * N

    weights = (pew, params['patch_b'], params['ln1_g'], params['ln1_b'],
               qkv_w, qkv_b, params['rel_bias'],
               pw, params['proj_b'], params['ln2_g'], params['ln2_b'],
               w1, params['fc1_b'], w2, params['fc2_b'],
               params['ln_f_g'], params['ln_f_b'])

    flops = 2 * M * (Cpp * D + 3 * D * D + 2 * T * D + D * D + 2 * D * hidden)
    bytes_accessed = (xp.size * 2 + M * D * 4 + B * D * 4
                      + sum(int(w.size) * int(w.dtype.itemsize) for w in weights))
    cost = pl.CostEstimate(flops=int(flops),
                           transcendentals=int(M * (num_heads * T + hidden)),
                           bytes_accessed=int(bytes_accessed))

    feats, pooled = pl.pallas_call(
        partial(_swin_block_kernel, num_heads, T, N),
        out_shape=(jax.ShapeDtypeStruct((M, D), jnp.float32),
                   jax.ShapeDtypeStruct((B, 1, D), jnp.float32)),
        grid=(B // ib,),
        in_specs=[pl.BlockSpec((rows, Cpp), lambda i: (i, 0))]
                 + [_const_spec(w) for w in weights],
        out_specs=(pl.BlockSpec((rows, D), lambda i: (i, 0)),
                   pl.BlockSpec((ib, 1, D), lambda i: (i, 0, 0))),
        compiler_params=pltpu.CompilerParams(
            dimension_semantics=("parallel",),
            vmem_limit_bytes=48 * 1024 * 1024),
        cost_estimate=cost,
    )(xp, *weights)

    # window-ordered tokens -> spatial (B, N, D) order.
    # TODO(synk): could be folded into the kernel's output store (sublane permute); kept
    # as a single XLA transpose for lowering safety (no-op when wh == ww == 1).
    feats = feats.reshape(B, wh, ww, window, window, D)
    feats = feats.transpose(0, 1, 3, 2, 4, 5).reshape(B, N, D)
    return feats, pooled


# ----------------------------- parameter init ---------------------------------

def init_params(key, *, in_chans=3, patch=4, window=4, dim=32, num_heads=2, mlp_ratio=4):
    T = window * window
    keys = jax.random.split(key, 8)
    std = 0.02
    return {
        'patch_w':  std * jax.random.normal(keys[0], (in_chans * patch * patch, dim), jnp.float32),
        'patch_b':  jnp.zeros((1, dim), jnp.float32),
        'q_w':      std * jax.random.normal(keys[1], (dim, dim), jnp.float32),
        'q_b':      jnp.zeros((1, dim), jnp.float32),
        'k_w':      std * jax.random.normal(keys[2], (dim, dim), jnp.float32),
        'k_b':      jnp.zeros((1, dim), jnp.float32),
        'v_w':      std * jax.random.normal(keys[3], (dim, dim), jnp.float32),
        'v_b':      jnp.zeros((1, dim), jnp.float32),
        'proj_w':   std * jax.random.normal(keys[4], (dim, dim), jnp.float32),
        'proj_b':   jnp.zeros((1, dim), jnp.float32),
        'rel_bias': std * jax.random.normal(keys[5], (num_heads, T, T), jnp.float32),
        'ln1_g':    jnp.ones((1, dim), jnp.float32),
        'ln1_b':    jnp.zeros((1, dim), jnp.float32),
        'ln2_g':    jnp.ones((1, dim), jnp.float32),
        'ln2_b':    jnp.zeros((1, dim), jnp.float32),
        'fc1_w':    std * jax.random.normal(keys[6], (dim, mlp_ratio * dim), jnp.float32),
        'fc1_b':    jnp.zeros((1, mlp_ratio * dim), jnp.float32),
        'fc2_w':    std * jax.random.normal(keys[7], (mlp_ratio * dim, dim), jnp.float32),
        'fc2_b':    jnp.zeros((1, dim), jnp.float32),
        'ln_f_g':   jnp.ones((1, dim), jnp.float32),
        'ln_f_b':   jnp.zeros((1, dim), jnp.float32),
    }


# ----------------------------- main --------------------------------------------

if __name__ == "__main__":
    key = jax.random.PRNGKey(0)
    k_x, k_p = jax.random.split(key)

    B, C, H, W = 2, 3, 16, 16                 # small NCHW input
    x = jax.random.normal(k_x, (B, C, H, W), jnp.float32)

    params = init_params(k_p, in_chans=C, patch=4, window=4, dim=32, num_heads=2)

    fwd = jax.jit(partial(swin_vision_forward, patch=4, window=4, num_heads=2))
    feats, pooled = fwd(x, params)
    jax.block_until_ready(feats)
    jax.block_until_ready(pooled)

    assert feats.shape == (B, 16, 32)         # (B, num_tokens, dim)
    assert pooled.shape == (B, 1, 32)         # fetch_pool_data-style (B, 1, -1)
    assert bool(jnp.isfinite(feats).all()) and bool(jnp.isfinite(pooled).all())
    print("KERNEL_OK")
</pallas_src>

<mosaic_0001>
module attributes {stable_mosaic.version = 11 : i64} {
  func.func @_swin_block_kernel(%arg0: i32, %arg1: memref<16x48xbf16, #tpu.memory_space<vmem>>, %arg2: memref<48x32xbf16, #tpu.memory_space<vmem>>, %arg3: memref<1x32xf32, #tpu.memory_space<vmem>>, %arg4: memref<1x32xf32, #tpu.memory_space<vmem>>, %arg5: memref<1x32xf32, #tpu.memory_space<vmem>>, %arg6: memref<32x96xbf16, #tpu.memory_space<vmem>>, %arg7: memref<1x96xf32, #tpu.memory_space<vmem>>, %arg8: memref<2x16x16xf32, #tpu.memory_space<vmem>>, %arg9: memref<32x32xbf16, #tpu.memory_space<vmem>>, %arg10: memref<1x32xf32, #tpu.memory_space<vmem>>, %arg11: memref<1x32xf32, #tpu.memory_space<vmem>>, %arg12: memref<1x32xf32, #tpu.memory_space<vmem>>, %arg13: memref<32x128xbf16, #tpu.memory_space<vmem>>, %arg14: memref<1x128xf32, #tpu.memory_space<vmem>>, %arg15: memref<128x32xbf16, #tpu.memory_space<vmem>>, %arg16: memref<1x32xf32, #tpu.memory_space<vmem>>, %arg17: memref<1x32xf32, #tpu.memory_space<vmem>>, %arg18: memref<1x32xf32, #tpu.memory_space<vmem>>, %arg19: memref<16x32xf32, #tpu.memory_space<vmem>>, %arg20: memref<1x1x32xf32, #tpu.memory_space<vmem>>) attributes {dimension_semantics = [#tpu.dimension_semantics<parallel>], iteration_bounds = array<i64: 2>, scalar_prefetch = 0 : i64, scratch_operands = 0 : i64, tpu.core_type = #tpu.core_type<tc>, window_params = [{transform_indices = @transform_0, window_bounds = array<i64: 16, 48>}, {pipeline_mode = #tpu.pipeline_mode<synchronous>, transform_indices = @transform_1, window_bounds = array<i64: 48, 32>}, {pipeline_mode = #tpu.pipeline_mode<synchronous>, transform_indices = @transform_2, window_bounds = array<i64: 1, 32>}, {pipeline_mode = #tpu.pipeline_mode<synchronous>, transform_indices = @transform_3, window_bounds = array<i64: 1, 32>}, {pipeline_mode = #tpu.pipeline_mode<synchronous>, transform_indices = @transform_4, window_bounds = array<i64: 1, 32>}, {pipeline_mode = #tpu.pipeline_mode<synchronous>, transform_indices = @transform_5, window_bounds = array<i64: 32, 96>}, {pipeline_mode = #tpu.pipeline_mode<synchronous>, transform_indices = @transform_6, window_bounds = array<i64: 1, 96>}, {pipeline_mode = #tpu.pipeline_mode<synchronous>, transform_indices = @transform_7, window_bounds = array<i64: 2, 16, 16>}, {pipeline_mode = #tpu.pipeline_mode<synchronous>, transform_indices = @transform_8, window_bounds = array<i64: 32, 32>}, {pipeline_mode = #tpu.pipeline_mode<synchronous>, transform_indices = @transform_9, window_bounds = array<i64: 1, 32>}, {pipeline_mode = #tpu.pipeline_mode<synchronous>, transform_indices = @transform_10, window_bounds = array<i64: 1, 32>}, {pipeline_mode = #tpu.pipeline_mode<synchronous>, transform_indices = @transform_11, window_bounds = array<i64: 1, 32>}, {pipeline_mode = #tpu.pipeline_mode<synchronous>, transform_indices = @transform_12, window_bounds = array<i64: 32, 128>}, {pipeline_mode = #tpu.pipeline_mode<synchronous>, transform_indices = @transform_13, window_bounds = array<i64: 1, 128>}, {pipeline_mode = #tpu.pipeline_mode<synchronous>, transform_indices = @transform_14, window_bounds = array<i64: 128, 32>}, {pipeline_mode = #tpu.pipeline_mode<synchronous>, transform_indices = @transform_15, window_bounds = array<i64: 1, 32>}, {pipeline_mode = #tpu.pipeline_mode<synchronous>, transform_indices = @transform_16, window_bounds = array<i64: 1, 32>}, {pipeline_mode = #tpu.pipeline_mode<synchronous>, transform_indices = @transform_17, window_bounds = array<i64: 1, 32>}, {transform_indices = @transform_18, window_bounds = array<i64: 16, 32>}, {transform_indices = @transform_19, window_bounds = array<i64: 1, 1, 32>}]} {
    %c0 = arith.constant 0 : index
    %c0_0 = arith.constant 0 : index
    %0 = vector.load %arg1[%c0, %c0_0] : memref<16x48xbf16, #tpu.memory_space<vmem>>, vector<16x48xbf16>
    %c0_1 = arith.constant 0 : index
    %c0_2 = arith.constant 0 : index
    %1 = vector.load %arg2[%c0_1, %c0_2] : memref<48x32xbf16, #tpu.memory_space<vmem>>, vector<48x32xbf16>
    %cst = arith.constant dense<0.000000e+00> : vector<16x32xf32>
    %2 = tpu.matmul %0, %1, %cst {dimension_numbers = #tpu.dot_dimension_numbers<[1], [0], [0], [1], [0, 0, 1, 1], [], []>} : vector<16x48xbf16>, vector<48x32xbf16>, vector<16x32xf32> -> vector<16x32xf32>
    %c0_3 = arith.constant 0 : index
    %c0_4 = arith.constant 0 : index
    %3 = vector.load %arg3[%c0_3, %c0_4] : memref<1x32xf32, #tpu.memory_space<vmem>>, vector<1x32xf32>
    %4 = vector.broadcast %3 : vector<1x32xf32> to vector<16x32xf32>
    %5 = arith.addf %2, %4 : vector<16x32xf32>
    %c0_5 = arith.constant 0 : index
    %c0_6 = arith.constant 0 : index
    %6 = vector.load %arg4[%c0_5, %c0_6] : memref<1x32xf32, #tpu.memory_space<vmem>>, vector<1x32xf32>
    %c0_7 = arith.constant 0 : index
    %c0_8 = arith.constant 0 : index
    %7 = vector.load %arg5[%c0_7, %c0_8] : memref<1x32xf32, #tpu.memory_space<vmem>>, vector<1x32xf32>
    %cst_9 = arith.constant dense<0.000000e+00> : vector<16xf32>
    %8 = vector.multi_reduction <add>, %5, %cst_9 [1] : vector<16x32xf32> to vector<16xf32>
    %9 = vector.shape_cast %8 : vector<16xf32> to vector<16x1xf32>
    %cst_10 = arith.constant 3.200000e+01 : f32
    %10 = vector.broadcast %cst_10 : f32 to vector<16x1xf32>
    %11 = arith.divf %9, %10 : vector<16x1xf32>
    %12 = vector.broadcast %11 : vector<16x1xf32> to vector<16x32xf32>
    %13 = arith.subf %5, %12 : vector<16x32xf32>
    %14 = arith.mulf %13, %13 : vector<16x32xf32>
    %cst_11 = arith.constant dense<0.000000e+00> : vector<16xf32>
    %15 = vector.multi_reduction <add>, %14, %cst_11 [1] : vector<16x32xf32> to vector<16xf32>
    %16 = vector.shape_cast %15 : vector<16xf32> to vector<16x1xf32>
    %cst_12 = arith.constant 3.200000e+01 : f32
    %17 = vector.broadcast %cst_12 : f32 to vector<16x1xf32>
    %18 = arith.divf %16, %17 : vector<16x1xf32>
    %19 = vector.broadcast %11 : vector<16x1xf32> to vector<16x32xf32>
    %20 = arith.subf %5, %19 : vector<16x32xf32>
    %cst_13 = arith.constant 9.99999974E-6 : f32
    %21 = vector.broadcast %cst_13 : f32 to vector<16x1xf32>
    %22 = arith.addf %18, %21 : vector<16x1xf32>
    %23 = math.rsqrt %22 : vector<16x1xf32>
    %24 = vector.broadcast %23 : vector<16x1xf32> to vector<16x32xf32>
    %25 = arith.mulf %20, %24 : vector<16x32xf32>
    %26 = vector.broadcast %6 : vector<1x32xf32> to vector<16x32xf32>
    %27 = arith.mulf %25, %26 : vector<16x32xf32>
    %28 = vector.broadcast %7 : vector<1x32xf32> to vector<16x32xf32>
    %29 = arith.addf %27, %28 : vector<16x32xf32>
    %30 = arith.truncf %29 : vector<16x32xf32> to vector<16x32xbf16>
    %c0_14 = arith.constant 0 : index
    %c0_15 = arith.constant 0 : index
    %31 = vector.load %arg6[%c0_14, %c0_15] : memref<32x96xbf16, #tpu.memory_space<vmem>>, vector<32x96xbf16>
    %cst_16 = arith.constant dense<0.000000e+00> : vector<16x96xf32>
    %32 = tpu.matmul %30, %31, %cst_16 {dimension_numbers = #tpu.dot_dimension_numbers<[1], [0], [0], [1], [0, 0, 1, 1], [], []>} : vector<16x32xbf16>, vector<32x96xbf16>, vector<16x96xf32> -> vector<16x96xf32>
    %c0_17 = arith.constant 0 : index
    %c0_18 = arith.constant 0 : index
    %33 = vector.load %arg7[%c0_17, %c0_18] : memref<1x96xf32, #tpu.memory_space<vmem>>, vector<1x96xf32>
    %34 = vector.broadcast %33 : vector<1x96xf32> to vector<16x96xf32>
    %35 = arith.addf %32, %34 : vector<16x96xf32>
    %36 = vector.extract_strided_slice %35 {offsets = [0, 0], sizes = [16, 32], strides = [1, 1]} : vector<16x96xf32> to vector<16x32xf32>
    %37 = arith.truncf %36 : vector<16x32xf32> to vector<16x32xbf16>
    %38 = vector.shape_cast %37 : vector<16x32xbf16> to vector<1x16x32xbf16>
    %39 = vector.extract_strided_slice %35 {offsets = [0, 32], sizes = [16, 32], strides = [1, 1]} : vector<16x96xf32> to vector<16x32xf32>
    %40 = arith.truncf %39 : vector<16x32xf32> to vector<16x32xbf16>
    %41 = vector.shape_cast %40 : vector<16x32xbf16> to vector<1x16x32xbf16>
    %42 = vector.extract_strided_slice %35 {offsets = [0, 64], sizes = [16, 32], strides = [1, 1]} : vector<16x96xf32> to vector<16x32xf32>
    %43 = arith.truncf %42 : vector<16x32xf32> to vector<16x32xbf16>
    %44 = vector.shape_cast %43 : vector<16x32xbf16> to vector<1x16x32xbf16>
    %45 = vector.extract_strided_slice %38 {offsets = [0, 0, 0], sizes = [1, 16, 16], strides = [1, 1, 1]} : vector<1x16x32xbf16> to vector<1x16x16xbf16>
    %46 = vector.extract_strided_slice %41 {offsets = [0, 0, 0], sizes = [1, 16, 16], strides = [1, 1, 1]} : vector<1x16x32xbf16> to vector<1x16x16xbf16>
    "tpu.trace_start"() <{level = 10 : i32, message = "bqd,bkd->bqk"}> : () -> ()
    %cst_19 = arith.constant dense<0.000000e+00> : vector<1x16x16xf32>
    %47 = tpu.matmul %45, %46, %cst_19 {dimension_numbers = #tpu.dot_dimension_numbers<[2], [2], [1], [1], [0, 0, 0, 1, 1, 1], [0], [0]>} : vector<1x16x16xbf16>, vector<1x16x16xbf16>, vector<1x16x16xf32> -> vector<1x16x16xf32>
    "tpu.trace_stop"() : () -> ()
    %c0_20 = arith.constant 0 : index
    %c0_21 = arith.constant 0 : index
    %c0_22 = arith.constant 0 : index
    %48 = vector.load %arg8[%c0_20, %c0_21, %c0_22] : memref<2x16x16xf32, #tpu.memory_space<vmem>>, vector<1x16x16xf32>
    %49 = vector.shape_cast %48 : vector<1x16x16xf32> to vector<16x16xf32>
    %50 = vector.shape_cast %49 : vector<16x16xf32> to vector<1x16x16xf32>
    %51 = arith.addf %47, %50 : vector<1x16x16xf32>
    %cst_23 = arith.constant dense<0xFF800000> : vector<1x16xf32>
    %52 = vector.multi_reduction <maximumf>, %51, %cst_23 [2] : vector<1x16x16xf32> to vector<1x16xf32>
    %53 = vector.shape_cast %52 : vector<1x16xf32> to vector<1x16x1xf32>
    %54 = vector.broadcast %53 : vector<1x16x1xf32> to vector<1x16x16xf32>
    %55 = arith.subf %51, %54 : vector<1x16x16xf32>
    %56 = math.exp %55 : vector<1x16x16xf32>
    %cst_24 = arith.constant dense<0.000000e+00> : vector<1x16xf32>
    %57 = vector.multi_reduction <add>, %56, %cst_24 [2] : vector<1x16x16xf32> to vector<1x16xf32>
    %58 = vector.shape_cast %57 : vector<1x16xf32> to vector<1x16x1xf32>
    %59 = tpu.reciprocal %58 {approx = true} : vector<1x16x1xf32> -> vector<1x16x1xf32>
    %60 = vector.broadcast %59 : vector<1x16x1xf32> to vector<1x16x16xf32>
    %61 = arith.mulf %56, %60 : vector<1x16x16xf32>
    %62 = arith.truncf %61 : vector<1x16x16xf32> to vector<1x16x16xbf16>
    %63 = vector.extract_strided_slice %44 {offsets = [0, 0, 0], sizes = [1, 16, 16], strides = [1, 1, 1]} : vector<1x16x32xbf16> to vector<1x16x16xbf16>
    "tpu.trace_start"() <{level = 10 : i32, message = "bqk,bkd->bqd"}> : () -> ()
    %cst_25 = arith.constant dense<0.000000e+00> : vector<1x16x16xf32>
    %64 = tpu.matmul %62, %63, %cst_25 {dimension_numbers = #tpu.dot_dimension_numbers<[2], [1], [1], [2], [0, 0, 0, 1, 1, 2], [0], [0]>} : vector<1x16x16xbf16>, vector<1x16x16xbf16>, vector<1x16x16xf32> -> vector<1x16x16xf32>
    "tpu.trace_stop"() : () -> ()
    %65 = vector.extract_strided_slice %38 {offsets = [0, 0, 16], sizes = [1, 16, 16], strides = [1, 1, 1]} : vector<1x16x32xbf16> to vector<1x16x16xbf16>
    %66 = vector.extract_strided_slice %41 {offsets = [0, 0, 16], sizes = [1, 16, 16], strides = [1, 1, 1]} : vector<1x16x32xbf16> to vector<1x16x16xbf16>
    "tpu.trace_start"() <{level = 10 : i32, message = "bqd,bkd->bqk"}> : () -> ()
    %cst_26 = arith.constant dense<0.000000e+00> : vector<1x16x16xf32>
    %67 = tpu.matmul %65, %66, %cst_26 {dimension_numbers = #tpu.dot_dimension_numbers<[2], [2], [1], [1], [0, 0, 0, 1, 1, 1], [0], [0]>} : vector<1x16x16xbf16>, vector<1x16x16xbf16>, vector<1x16x16xf32> -> vector<1x16x16xf32>
    "tpu.trace_stop"() : () -> ()
    %c1 = arith.constant 1 : index
    %c0_27 = arith.constant 0 : index
    %c0_28 = arith.constant 0 : index
    %68 = vector.load %arg8[%c1, %c0_27, %c0_28] : memref<2x16x16xf32, #tpu.memory_space<vmem>>, vector<1x16x16xf32>
    %69 = vector.shape_cast %68 : vector<1x16x16xf32> to vector<16x16xf32>
    %70 = vector.shape_cast %69 : vector<16x16xf32> to vector<1x16x16xf32>
    %71 = arith.addf %67, %70 : vector<1x16x16xf32>
    %cst_29 = arith.constant dense<0xFF800000> : vector<1x16xf32>
    %72 = vector.multi_reduction <maximumf>, %71, %cst_29 [2] : vector<1x16x16xf32> to vector<1x16xf32>
    %73 = vector.shape_cast %72 : vector<1x16xf32> to vector<1x16x1xf32>
    %74 = vector.broadcast %73 : vector<1x16x1xf32> to vector<1x16x16xf32>
    %75 = arith.subf %71, %74 : vector<1x16x16xf32>
    %76 = math.exp %75 : vector<1x16x16xf32>
    %cst_30 = arith.constant dense<0.000000e+00> : vector<1x16xf32>
    %77 = vector.multi_reduction <add>, %76, %cst_30 [2] : vector<1x16x16xf32> to vector<1x16xf32>
    %78 = vector.shape_cast %77 : vector<1x16xf32> to vector<1x16x1xf32>
    %79 = tpu.reciprocal %78 {approx = true} : vector<1x16x1xf32> -> vector<1x16x1xf32>
    %80 = vector.broadcast %79 : vector<1x16x1xf32> to vector<1x16x16xf32>
    %81 = arith.mulf %76, %80 : vector<1x16x16xf32>
    %82 = arith.truncf %81 : vector<1x16x16xf32> to vector<1x16x16xbf16>
    %83 = vector.extract_strided_slice %44 {offsets = [0, 0, 16], sizes = [1, 16, 16], strides = [1, 1, 1]} : vector<1x16x32xbf16> to vector<1x16x16xbf16>
    "tpu.trace_start"() <{level = 10 : i32, message = "bqk,bkd->bqd"}> : () -> ()
    %cst_31 = arith.constant dense<0.000000e+00> : vector<1x16x16xf32>
    %84 = tpu.matmul %82, %83, %cst_31 {dimension_numbers = #tpu.dot_dimension_numbers<[2], [1], [1], [2], [0, 0, 0, 1, 1, 2], [0], [0]>} : vector<1x16x16xbf16>, vector<1x16x16xbf16>, vector<1x16x16xf32> -> vector<1x16x16xf32>
    "tpu.trace_stop"() : () -> ()
    %85 = tpu.concatenate %64, %84 in 2 : vector<1x16x16xf32>, vector<1x16x16xf32> -> vector<1x16x32xf32>
    %86 = vector.shape_cast %85 : vector<1x16x32xf32> to vector<16x32xf32>
    %87 = arith.truncf %86 : vector<16x32xf32> to vector<16x32xbf16>
    %c0_32 = arith.constant 0 : index
    %c0_33 = arith.constant 0 : index
    %88 = vector.load %arg9[%c0_32, %c0_33] : memref<32x32xbf16, #tpu.memory_space<vmem>>, vector<32x32xbf16>
    %cst_34 = arith.constant dense<0.000000e+00> : vector<16x32xf32>
    %89 = tpu.matmul %87, %88, %cst_34 {dimension_numbers = #tpu.dot_dimension_numbers<[1], [0], [0], [1], [0, 0, 1, 1], [], []>} : vector<16x32xbf16>, vector<32x32xbf16>, vector<16x32xf32> -> vector<16x32xf32>
    %90 = arith.addf %5, %89 : vector<16x32xf32>
    %c0_35 = arith.constant 0 : index
    %c0_36 = arith.constant 0 : index
    %91 = vector.load %arg10[%c0_35, %c0_36] : memref<1x32xf32, #tpu.memory_space<vmem>>, vector<1x32xf32>
    %92 = vector.broadcast %91 : vector<1x32xf32> to vector<16x32xf32>
    %93 = arith.addf %90, %92 : vector<16x32xf32>
    %c0_37 = arith.constant 0 : index
    %c0_38 = arith.constant 0 : index
    %94 = vector.load %arg11[%c0_37, %c0_38] : memref<1x32xf32, #tpu.memory_space<vmem>>, vector<1x32xf32>
    %c0_39 = arith.constant 0 : index
    %c0_40 = arith.constant 0 : index
    %95 = vector.load %arg12[%c0_39, %c0_40] : memref<1x32xf32, #tpu.memory_space<vmem>>, vector<1x32xf32>
    %cst_41 = arith.constant dense<0.000000e+00> : vector<16xf32>
    %96 = vector.multi_reduction <add>, %93, %cst_41 [1] : vector<16x32xf32> to vector<16xf32>
    %97 = vector.shape_cast %96 : vector<16xf32> to vector<16x1xf32>
    %cst_42 = arith.constant 3.200000e+01 : f32
    %98 = vector.broadcast %cst_42 : f32 to vector<16x1xf32>
    %99 = arith.divf %97, %98 : vector<16x1xf32>
    %100 = vector.broadcast %99 : vector<16x1xf32> to vector<16x32xf32>
    %101 = arith.subf %93, %100 : vector<16x32xf32>
    %102 = arith.mulf %101, %101 : vector<16x32xf32>
    %cst_43 = arith.constant dense<0.000000e+00> : vector<16xf32>
    %103 = vector.multi_reduction <add>, %102, %cst_43 [1] : vector<16x32xf32> to vector<16xf32>
    %104 = vector.shape_cast %103 : vector<16xf32> to vector<16x1xf32>
    %cst_44 = arith.constant 3.200000e+01 : f32
    %105 = vector.broadcast %cst_44 : f32 to vector<16x1xf32>
    %106 = arith.divf %104, %105 : vector<16x1xf32>
    %107 = vector.broadcast %99 : vector<16x1xf32> to vector<16x32xf32>
    %108 = arith.subf %93, %107 : vector<16x32xf32>
    %cst_45 = arith.constant 9.99999974E-6 : f32
    %109 = vector.broadcast %cst_45 : f32 to vector<16x1xf32>
    %110 = arith.addf %106, %109 : vector<16x1xf32>
    %111 = math.rsqrt %110 : vector<16x1xf32>
    %112 = vector.broadcast %111 : vector<16x1xf32> to vector<16x32xf32>
    %113 = arith.mulf %108, %112 : vector<16x32xf32>
    %114 = vector.broadcast %94 : vector<1x32xf32> to vector<16x32xf32>
    %115 = arith.mulf %113, %114 : vector<16x32xf32>
    %116 = vector.broadcast %95 : vector<1x32xf32> to vector<16x32xf32>
    %117 = arith.addf %115, %116 : vector<16x32xf32>
    %118 = arith.truncf %117 : vector<16x32xf32> to vector<16x32xbf16>
    %c0_46 = arith.constant 0 : index
    %c0_47 = arith.constant 0 : index
    %119 = vector.load %arg13[%c0_46, %c0_47] : memref<32x128xbf16, #tpu.memory_space<vmem>>, vector<32x128xbf16>
    %cst_48 = arith.constant dense<0.000000e+00> : vector<16x128xf32>
    %120 = tpu.matmul %118, %119, %cst_48 {dimension_numbers = #tpu.dot_dimension_numbers<[1], [0], [0], [1], [0, 0, 1, 1], [], []>} : vector<16x32xbf16>, vector<32x128xbf16>, vector<16x128xf32> -> vector<16x128xf32>
    %c0_49 = arith.constant 0 : index
    %c0_50 = arith.constant 0 : index
    %121 = vector.load %arg14[%c0_49, %c0_50] : memref<1x128xf32, #tpu.memory_space<vmem>>, vector<1x128xf32>
    %122 = vector.broadcast %121 : vector<1x128xf32> to vector<16x128xf32>
    %123 = arith.addf %120, %122 : vector<16x128xf32>
    %124 = arith.mulf %123, %123 : vector<16x128xf32>
    %125 = arith.mulf %123, %124 : vector<16x128xf32>
    %cst_51 = arith.constant 4.471500e-02 : f32
    %126 = vector.broadcast %cst_51 : f32 to vector<16x128xf32>
    %127 = arith.mulf %126, %125 : vector<16x128xf32>
    %128 = arith.addf %123, %127 : vector<16x128xf32>
    %cst_52 = arith.constant 0.797884583 : f32
    %129 = vector.broadcast %cst_52 : f32 to vector<16x128xf32>
    %130 = arith.mulf %129, %128 : vector<16x128xf32>
    %131 = math.tanh %130 : vector<16x128xf32>
    %cst_53 = arith.constant 1.000000e+00 : f32
    %132 = vector.broadcast %cst_53 : f32 to vector<16x128xf32>
    %133 = arith.addf %132, %131 : vector<16x128xf32>
    %cst_54 = arith.constant 5.000000e-01 : f32
    %134 = vector.broadcast %cst_54 : f32 to vector<16x128xf32>
    %135 = arith.mulf %134, %133 : vector<16x128xf32>
    %136 = arith.mulf %123, %135 : vector<16x128xf32>
    %137 = arith.truncf %136 : vector<16x128xf32> to vector<16x128xbf16>
    %c0_55 = arith.constant 0 : index
    %c0_56 = arith.constant 0 : index
    %138 = vector.load %arg15[%c0_55, %c0_56] : memref<128x32xbf16, #tpu.memory_space<vmem>>, vector<128x32xbf16>
    %cst_57 = arith.constant dense<0.000000e+00> : vector<16x32xf32>
    %139 = tpu.matmul %137, %138, %cst_57 {dimension_numbers = #tpu.dot_dimension_numbers<[1], [0], [0], [1], [0, 0, 1, 1], [], []>} : vector<16x128xbf16>, vector<128x32xbf16>, vector<16x32xf32> -> vector<16x32xf32>
    %140 = arith.addf %93, %139 : vector<16x32xf32>
    %c0_58 = arith.constant 0 : index
    %c0_59 = arith.constant 0 : index
    %141 = vector.load %arg16[%c0_58, %c0_59] : memref<1x32xf32, #tpu.memory_space<vmem>>, vector<1x32xf32>
    %142 = vector.broadcast %141 : vector<1x32xf32> to vector<16x32xf32>
    %143 = arith.addf %140, %142 : vector<16x32xf32>
    %c0_60 = arith.constant 0 : index
    %c0_61 = arith.constant 0 : index
    %144 = vector.load %arg17[%c0_60, %c0_61] : memref<1x32xf32, #tpu.memory_space<vmem>>, vector<1x32xf32>
    %c0_62 = arith.constant 0 : index
    %c0_63 = arith.constant 0 : index
    %145 = vector.load %arg18[%c0_62, %c0_63] : memref<1x32xf32, #tpu.memory_space<vmem>>, vector<1x32xf32>
    %cst_64 = arith.constant dense<0.000000e+00> : vector<16xf32>
    %146 = vector.multi_reduction <add>, %143, %cst_64 [1] : vector<16x32xf32> to vector<16xf32>
    %147 = vector.shape_cast %146 : vector<16xf32> to vector<16x1xf32>
    %cst_65 = arith.constant 3.200000e+01 : f32
    %148 = vector.broadcast %cst_65 : f32 to vector<16x1xf32>
    %149 = arith.divf %147, %148 : vector<16x1xf32>
    %150 = vector.broadcast %149 : vector<16x1xf32> to vector<16x32xf32>
    %151 = arith.subf %143, %150 : vector<16x32xf32>
    %152 = arith.mulf %151, %151 : vector<16x32xf32>
    %cst_66 = arith.constant dense<0.000000e+00> : vector<16xf32>
    %153 = vector.multi_reduction <add>, %152, %cst_66 [1] : vector<16x32xf32> to vector<16xf32>
    %154 = vector.shape_cast %153 : vector<16xf32> to vector<16x1xf32>
    %cst_67 = arith.constant 3.200000e+01 : f32
    %155 = vector.broadcast %cst_67 : f32 to vector<16x1xf32>
    %156 = arith.divf %154, %155 : vector<16x1xf32>
    %157 = vector.broadcast %149 : vector<16x1xf32> to vector<16x32xf32>
    %158 = arith.subf %143, %157 : vector<16x32xf32>
    %cst_68 = arith.constant 9.99999974E-6 : f32
    %159 = vector.broadcast %cst_68 : f32 to vector<16x1xf32>
    %160 = arith.addf %156, %159 : vector<16x1xf32>
    %161 = math.rsqrt %160 : vector<16x1xf32>
    %162 = vector.broadcast %161 : vector<16x1xf32> to vector<16x32xf32>
    %163 = arith.mulf %158, %162 : vector<16x32xf32>
    %164 = vector.broadcast %144 : vector<1x32xf32> to vector<16x32xf32>
    %165 = arith.mulf %163, %164 : vector<16x32xf32>
    %166 = vector.broadcast %145 : vector<1x32xf32> to vector<16x32xf32>
    %167 = arith.addf %165, %166 : vector<16x32xf32>
    %c0_69 = arith.constant 0 : index
    %c0_70 = arith.constant 0 : index
    %168 = vector.load %arg19[%c0_69, %c0_70] : memref<16x32xf32, #tpu.memory_space<vmem>>, vector<16x32xf32>
    tpu.vector_store %arg19[%c0_69, %c0_70], %167 {strides = array<i32>} : memref<16x32xf32, #tpu.memory_space<vmem>>, vector<16x32xf32>,
    %169 = vector.shape_cast %167 : vector<16x32xf32> to vector<1x16x32xf32>
    %cst_71 = arith.constant dense<0.000000e+00> : vector<1x32xf32>
    %170 = vector.multi_reduction <add>, %169, %cst_71 [1] : vector<1x16x32xf32> to vector<1x32xf32>
    %171 = vector.shape_cast %170 : vector<1x32xf32> to vector<1x1x32xf32>
    %cst_72 = arith.constant 1.600000e+01 : f32
    %172 = vector.broadcast %cst_72 : f32 to vector<1x1x32xf32>
    %173 = arith.divf %171, %172 : vector<1x1x32xf32>
    %c0_73 = arith.constant 0 : index
    %c0_74 = arith.constant 0 : index
    %c0_75 = arith.constant 0 : index
    %174 = vector.load %arg20[%c0_73, %c0_74, %c0_75] : memref<1x1x32xf32, #tpu.memory_space<vmem>>, vector<1x1x32xf32>
    tpu.vector_store %arg20[%c0_73, %c0_74, %c0_75], %173 {strides = array<i32>} : memref<1x1x32xf32, #tpu.memory_space<vmem>>, vector<1x1x32xf32>,
    return
  }
  func.func @transform_0(%arg0: i32) -> (i32, i32) {
    %c0_i32 = arith.constant 0 : i32
    %c0_i32_0 = arith.constant 0 : i32
    return %arg0, %c0_i32 : i32, i32
  }
  func.func @transform_1(%arg0: i32) -> (i32, i32) {
    %c0_i32 = arith.constant 0 : i32
    %c0_i32_0 = arith.constant 0 : i32
    %c0_i32_1 = arith.constant 0 : i32
    return %c0_i32, %c0_i32_0 : i32, i32
  }
  func.func @transform_2(%arg0: i32) -> (i32, i32) {
    %c0_i32 = arith.constant 0 : i32
    %c0_i32_0 = arith.constant 0 : i32
    %c0_i32_1 = arith.constant 0 : i32
    return %c0_i32, %c0_i32_0 : i32, i32
  }
  func.func @transform_3(%arg0: i32) -> (i32, i32) {
    %c0_i32 = arith.constant 0 : i32
    %c0_i32_0 = arith.constant 0 : i32
    %c0_i32_1 = arith.constant 0 : i32
    return %c0_i32, %c0_i32_0 : i32, i32
  }
  func.func @transform_4(%arg0: i32) -> (i32, i32) {
    %c0_i32 = arith.constant 0 : i32
    %c0_i32_0 = arith.constant 0 : i32
    %c0_i32_1 = arith.constant 0 : i32
    return %c0_i32, %c0_i32_0 : i32, i32
  }
  func.func @transform_5(%arg0: i32) -> (i32, i32) {
    %c0_i32 = arith.constant 0 : i32
    %c0_i32_0 = arith.constant 0 : i32
    %c0_i32_1 = arith.constant 0 : i32
    return %c0_i32, %c0_i32_0 : i32, i32
  }
  func.func @transform_6(%arg0: i32) -> (i32, i32) {
    %c0_i32 = arith.constant 0 : i32
    %c0_i32_0 = arith.constant 0 : i32
    %c0_i32_1 = arith.constant 0 : i32
    return %c0_i32, %c0_i32_0 : i32, i32
  }
  func.func @transform_7(%arg0: i32) -> (i32, i32, i32) {
    %c0_i32 = arith.constant 0 : i32
    %c0_i32_0 = arith.constant 0 : i32
    %c0_i32_1 = arith.constant 0 : i32
    %c0_i32_2 = arith.constant 0 : i32
    return %c0_i32, %c0_i32_0, %c0_i32_1 : i32, i32, i32
  }
  func.func @transform_8(%arg0: i32) -> (i32, i32) {
    %c0_i32 = arith.constant 0 : i32
    %c0_i32_0 = arith.constant 0 : i32
    %c0_i32_1 = arith.constant 0 : i32
    return %c0_i32, %c0_i32_0 : i32, i32
  }
  func.func @transform_9(%arg0: i32) -> (i32, i32) {
    %c0_i32 = arith.constant 0 : i32
    %c0_i32_0 = arith.constant 0 : i32
    %c0_i32_1 = arith.constant 0 : i32
    return %c0_i32, %c0_i32_0 : i32, i32
  }
  func.func @transform_10(%arg0: i32) -> (i32, i32) {
    %c0_i32 = arith.constant 0 : i32
    %c0_i32_0 = arith.constant 0 : i32
    %c0_i32_1 = arith.constant 0 : i32
    return %c0_i32, %c0_i32_0 : i32, i32
  }
  func.func @transform_11(%arg0: i32) -> (i32, i32) {
    %c0_i32 = arith.constant 0 : i32
    %c0_i32_0 = arith.constant 0 : i32
    %c0_i32_1 = arith.constant 0 : i32
    return %c0_i32, %c0_i32_0 : i32, i32
  }
  func.func @transform_12(%arg0: i32) -> (i32, i32) {
    %c0_i32 = arith.constant 0 : i32
    %c0_i32_0 = arith.constant 0 : i32
    %c0_i32_1 = arith.constant 0 : i32
    return %c0_i32, %c0_i32_0 : i32, i32
  }
  func.func @transform_13(%arg0: i32) -> (i32, i32) {
    %c0_i32 = arith.constant 0 : i32
    %c0_i32_0 = arith.constant 0 : i32
    %c0_i32_1 = arith.constant 0 : i32
    return %c0_i32, %c0_i32_0 : i32, i32
  }
  func.func @transform_14(%arg0: i32) -> (i32, i32) {
    %c0_i32 = arith.constant 0 : i32
    %c0_i32_0 = arith.constant 0 : i32
    %c0_i32_1 = arith.constant 0 : i32
    return %c0_i32, %c0_i32_0 : i32, i32
  }
  func.func @transform_15(%arg0: i32) -> (i32, i32) {
    %c0_i32 = arith.constant 0 : i32
    %c0_i32_0 = arith.constant 0 : i32
    %c0_i32_1 = arith.constant 0 : i32
    return %c0_i32, %c0_i32_0 : i32, i32
  }
  func.func @transform_16(%arg0: i32) -> (i32, i32) {
    %c0_i32 = arith.constant 0 : i32
    %c0_i32_0 = arith.constant 0 : i32
    %c0_i32_1 = arith.constant 0 : i32
    return %c0_i32, %c0_i32_0 : i32, i32
  }
  func.func @transform_17(%arg0: i32) -> (i32, i32) {
    %c0_i32 = arith.constant 0 : i32
    %c0_i32_0 = arith.constant 0 : i32
    %c0_i32_1 = arith.constant 0 : i32
    return %c0_i32, %c0_i32_0 : i32, i32
  }
  func.func @transform_18(%arg0: i32) -> (i32, i32) {
    %c0_i32 = arith.constant 0 : i32
    %c0_i32_0 = arith.constant 0 : i32
    return %arg0, %c0_i32 : i32, i32
  }
  func.func @transform_19(%arg0: i32) -> (i32, i32, i32) {
    %c0_i32 = arith.constant 0 : i32
    %c0_i32_0 = arith.constant 0 : i32
    %c0_i32_1 = arith.constant 0 : i32
    return %arg0, %c0_i32, %c0_i32_0 : i32, i32, i32
  }
}

</mosaic_0001>

<llo_original>
// kernel: swin_vision_forward.1
$region0: #{swin_vision_forward.1}
  #allocation0 [shape = 'u32[]', space=smem, size = 0x4, offset = 0x4, fixed_abs, tag = 'smem constant byte address 0x4 - core index']
  #allocation1 [shape = 'u32[144,128]{1,0:T(1,128)}', space=vmem, size = 0x12000, scoped, tag = 'internal scratch']
  %s0 = inlined_call_operand.vmem [shape: bf16[32,48], index: 0, kind: input, shape index: {}]
  %s1 = inlined_call_operand.vmem [shape: bf16[48,32], index: 1, kind: input, shape index: {}]
  %s2 = inlined_call_operand.vmem [shape: f32[1,32], index: 2, kind: input, shape index: {}]
  %s3 = inlined_call_operand.vmem [shape: f32[1,32], index: 3, kind: input, shape index: {}]
  %s4 = inlined_call_operand.vmem [shape: f32[1,32], index: 4, kind: input, shape index: {}]
  %s5 = inlined_call_operand.vmem [shape: bf16[32,96], index: 5, kind: input, shape index: {}]
  %s6 = inlined_call_operand.vmem [shape: f32[1,96], index: 6, kind: input, shape index: {}]
  %s7 = inlined_call_operand.vmem [shape: f32[2,16,16], index: 7, kind: input, shape index: {}]
  %s8 = inlined_call_operand.vmem [shape: bf16[32,32], index: 8, kind: input, shape index: {}]
  %s9 = inlined_call_operand.vmem [shape: f32[1,32], index: 9, kind: input, shape index: {}]
  %s10 = inlined_call_operand.vmem [shape: f32[1,32], index: 10, kind: input, shape index: {}]
  %s11 = inlined_call_operand.vmem [shape: f32[1,32], index: 11, kind: input, shape index: {}]
  %s12 = inlined_call_operand.vmem [shape: bf16[32,128], index: 12, kind: input, shape index: {}]
  %s13 = inlined_call_operand.vmem [shape: f32[1,128], index: 13, kind: input, shape index: {}]
  %s14 = inlined_call_operand.vmem [shape: bf16[128,32], index: 14, kind: input, shape index: {}]
  %s15 = inlined_call_operand.vmem [shape: f32[1,32], index: 15, kind: input, shape index: {}]
  %s16 = inlined_call_operand.vmem [shape: f32[1,32], index: 16, kind: input, shape index: {}]
  %s17 = inlined_call_operand.vmem [shape: f32[1,32], index: 17, kind: input, shape index: {}]
  %s18 = inlined_call_operand.hbm [shape: f32[32,32], index: 18, kind: output, shape index: {0}]
  %s19 = inlined_call_operand.hbm [shape: f32[2,1,32], index: 19, kind: output, shape index: {1}]
  %20 = xla_tuple %s18, %s19
  %s21 = sld [smem:[#allocation0]]
  $region113: #{swin_vision_forward.1} parent=0
    _
  %s23 = ssub.s32 1, %s21
  %s24 = scalar_select 0, %s23, %s21
  $region1: #{swin_vision_forward.1} parent=0
    #allocation2 [shape = 'u8[16384]{0}', space=vmem, size = 0x4000, scoped, tag = 'output window, operand 0']
    #allocation3 [shape = 's32[2]{0}', space=sflag, size = 0x8, scoped, tag = 'scoped memory for swin_vision_forward.1']
    #allocation4 [shape = 'u8[1024]{0}', space=vmem, size = 0x400, scoped, tag = 'output window, operand 1']
    #allocation5 [shape = 's32[2]{0}', space=sflag, size = 0x8, scoped, tag = 'scoped memory for swin_vision_forward.1']
    %25 = vsyncpa [#allocation3], 0
    %s26 = scalar_lea.sflag [#allocation3], 1
    %27 = vsyncpa %s26, 0
    %28 = vsyncpa [#allocation5], 0
    %s29 = scalar_lea.sflag [#allocation5], 1
    %30 = vsyncpa %s29, 0
    loop: start=0, step=1, limit=4
    $region2: #{swin_vision_forward.1} parent=1 // loop_pre_header
      _
    $region3: #{swin_vision_forward.1} parent=1 // loop_header
      %s32 = sphi 0, %s36
      %p33 = scmp.ge.s32.totalorder %s32, 4
      %s42 = sphi 0, %s44
      %s45 = sphi 0, %s42
      %s46 = sphi 0, %s45
      %s62 = sphi 0, %s46
      %s66 = sphi 0, %s66
      %s68 = sphi 0, %s66
      %s69 = sphi 0, %s68
      %s83 = sphi 0, %s69
      %s87 = sphi 0, %s87
      %s89 = sphi 0, %s87
      %s90 = sphi 0, %s89
      %s104 = sphi 0, %s90
      %s108 = sphi 0, %s108
      %s110 = sphi 0, %s108
      %s111 = sphi 0, %s110
      %s125 = sphi 0, %s111
      %s129 = sphi 0, %s129
      %s131 = sphi 0, %s129
      %s132 = sphi 0, %s131
      %s146 = sphi 0, %s132
      %s150 = sphi 0, %s150
      %s152 = sphi 0, %s150
      %s153 = sphi 0, %s152
      %s167 = sphi 0, %s153
      %s171 = sphi 0, %s171
      %s173 = sphi 0, %s171
      %s174 = sphi 0, %s173
      %s188 = sphi 0, %s174
      %s192 = sphi 0, %s192
      %s194 = sphi 0, %s192
      %s195 = sphi 0, %s194
      %s209 = sphi 0, %s195
      %s213 = sphi 0, %s213
      %s215 = sphi 0, %s213
      %s216 = sphi 0, %s215
      %s230 = sphi 0, %s216
      %s234 = sphi 0, %s234
      %s236 = sphi 0, %s234
      %s237 = sphi 0, %s236
      %s251 = sphi 0, %s237
      %s255 = sphi 0, %s255
      %s257 = sphi 0, %s255
      %s258 = sphi 0, %s257
      %s272 = sphi 0, %s258
      %s276 = sphi 0, %s276
      %s278 = sphi 0, %s276
      %s279 = sphi 0, %s278
      %s293 = sphi 0, %s279
      %s297 = sphi 0, %s297
      %s299 = sphi 0, %s297
      %s300 = sphi 0, %s299
      %s314 = sphi 0, %s300
      %s318 = sphi 0, %s318
      %s320 = sphi 0, %s318
      %s321 = sphi 0, %s320
      %s335 = sphi 0, %s321
      %s339 = sphi 0, %s339
      %s341 = sphi 0, %s339
      %s342 = sphi 0, %s341
      %s356 = sphi 0, %s342
      %s360 = sphi 0, %s360
      %s362 = sphi 0, %s360
      %s363 = sphi 0, %s362
      %s377 = sphi 0, %s363
      %s381 = sphi 0, %s381
      %s383 = sphi 0, %s381
      %s384 = sphi 0, %s383
      %s398 = sphi 0, %s384
      %s402 = sphi 0, %s402
      %s404 = sphi 0, %s402
      %s405 = sphi 0, %s404
      %s419 = sphi 0, %s405
      %s425 = sphi 0, %s427
      %s428 = sphi 0, %s425
      %s429 = sphi 0, %s428
      %s445 = sphi 0, %s429
      %s451 = sphi 0, %s453
      %s454 = sphi 0, %s451
      %s455 = sphi 0, %s454
      %s471 = sphi 0, %s455
    $region4: #{swin_vision_forward.1} parent=1 // loop_header_branch
      %35 = sbr.rel (%p33) target = $region8
    $region5: #{swin_vision_forward.1} parent=1 // loop_body
      %s37 = ssub.s32 %s32, 1
      %s38 = ssub.s32 %s32, 2
      %s39 = sadd.s32 %s32, 1
      %s40 = ssub.s32 %s32, %s39
      %p41 = scmp.eq.s32.totalorder %s40, 0
      %s43 = sadd.s32 %s42, 1
      %s44 = scalar_select %p41, %s42, %s43
      %p47 = pneg %p41
      %p48 = scmp.eq.s32.totalorder %s32, 1
      %p49 = por %p47, %p48
      %p50 = scmp.ne.s32.totalorder %s42, %s45
      %p51 = scmp.eq.s32.totalorder %s32, 0
      %p52 = por %p50, %p51
      %p53 = scmp.ne.s32.totalorder %s42, %s45
      %p54 = scmp.eq.s32.totalorder %s37, 1
      %p55 = por %p53, %p54
      %p56 = scmp.ne.s32.totalorder %s45, %s46
      %p57 = scmp.eq.s32.totalorder %s37, 0
      %p58 = por %p56, %p57
      %p59 = scmp.ne.s32.totalorder %s45, %s46
      %p60 = scmp.eq.s32.totalorder %s38, 1
      %p61 = por %p59, %p60
      %p63 = scmp.ne.s32.totalorder %s46, %s62
      %p64 = scmp.eq.s32.totalorder %s38, 0
      %p65 = por %p63, %p64
      %s67 = sadd.s32 %s66, 1
      %p70 = scmp.eq.s32.totalorder %s32, 1
      %p71 = scmp.ne.s32.totalorder %s66, %s68
      %p72 = scmp.eq.s32.totalorder %s32, 0
      %p73 = por %p71, %p72
      %p74 = scmp.ne.s32.totalorder %s66, %s68
      %p75 = scmp.eq.s32.totalorder %s37, 1
      %p76 = por %p74, %p75
      %p77 = scmp.ne.s32.totalorder %s68, %s69
      %p78 = scmp.eq.s32.totalorder %s37, 0
      %p79 = por %p77, %p78
      %p80 = scmp.ne.s32.totalorder %s68, %s69
      %p81 = scmp.eq.s32.totalorder %s38, 1
      %p82 = por %p80, %p81
      %p84 = scmp.ne.s32.totalorder %s69, %s83
      %p85 = scmp.eq.s32.totalorder %s38, 0
      %p86 = por %p84, %p85
      %s88 = sadd.s32 %s87, 1
      %p91 = scmp.eq.s32.totalorder %s32, 1
      %p92 = scmp.ne.s32.totalorder %s87, %s89
      %p93 = scmp.eq.s32.totalorder %s32, 0
      %p94 = por %p92, %p93
      %p95 = scmp.ne.s32.totalorder %s87, %s89
      %p96 = scmp.eq.s32.totalorder %s37, 1
      %p97 = por %p95, %p96
      %p98 = scmp.ne.s32.totalorder %s89, %s90
      %p99 = scmp.eq.s32.totalorder %s37, 0
      %p100 = por %p98, %p99
      %p101 = scmp.ne.s32.totalorder %s89, %s90
      %p102 = scmp.eq.s32.totalorder %s38, 1
      %p103 = por %p101, %p102
      %p105 = scmp.ne.s32.totalorder %s90, %s104
      %p106 = scmp.eq.s32.totalorder %s38, 0
      %p107 = por %p105, %p106
      %s109 = sadd.s32 %s108, 1
      %p112 = scmp.eq.s32.totalorder %s32, 1
      %p113 = scmp.ne.s32.totalorder %s108, %s110
      %p114 = scmp.eq.s32.totalorder %s32, 0
      %p115 = por %p113, %p114
      %p116 = scmp.ne.s32.totalorder %s108, %s110
      %p117 = scmp.eq.s32.totalorder %s37, 1
      %p118 = por %p116, %p117
      %p119 = scmp.ne.s32.totalorder %s110, %s111
      %p120 = scmp.eq.s32.totalorder %s37, 0
      %p121 = por %p119, %p120
      %p122 = scmp.ne.s32.totalorder %s110, %s111
      %p123 = scmp.eq.s32.totalorder %s38, 1
      %p124 = por %p122, %p123
      %p126 = scmp.ne.s32.totalorder %s111, %s125
      %p127 = scmp.eq.s32.totalorder %s38, 0
      %p128 = por %p126, %p127
      %s130 = sadd.s32 %s129, 1
      %p133 = scmp.eq.s32.totalorder %s32, 1
      %p134 = scmp.ne.s32.totalorder %s129, %s131
      %p135 = scmp.eq.s32.totalorder %s32, 0
      %p136 = por %p134, %p135
      %p137 = scmp.ne.s32.totalorder %s129, %s131
      %p138 = scmp.eq.s32.totalorder %s37, 1
      %p139 = por %p137, %p138
      %p140 = scmp.ne.s32.totalorder %s131, %s132
      %p141 = scmp.eq.s32.totalorder %s37, 0
      %p142 = por %p140, %p141
      %p143 = scmp.ne.s32.totalorder %s131, %s132
      %p144 = scmp.eq.s32.totalorder %s38, 1
      %p145 = por %p143, %p144
      %p147 = scmp.ne.s32.totalorder %s132, %s146
      %p148 = scmp.eq.s32.totalorder %s38, 0
      %p149 = por %p147, %p148
      %s151 = sadd.s32 %s150, 1
      %p154 = scmp.eq.s32.totalorder %s32, 1
      %p155 = scmp.ne.s32.totalorder %s150, %s152
      %p156 = scmp.eq.s32.totalorder %s32, 0
      %p157 = por %p155, %p156
      %p158 = scmp.ne.s32.totalorder %s150, %s152
      %p159 = scmp.eq.s32.totalorder %s37, 1
      %p160 = por %p158, %p159
      %p161 = scmp.ne.s32.totalorder %s152, %s153
      %p162 = scmp.eq.s32.totalorder %s37, 0
      %p163 = por %p161, %p162
      %p164 = scmp.ne.s32.totalorder %s152, %s153
      %p165 = scmp.eq.s32.totalorder %s38, 1
      %p166 = por %p164, %p165
      %p168 = scmp.ne.s32.totalorder %s153, %s167
      %p169 = scmp.eq.s32.totalorder %s38, 0
      %p170 = por %p168, %p169
      %s172 = sadd.s32 %s171, 1
      %p175 = scmp.eq.s32.totalorder %s32, 1
      %p176 = scmp.ne.s32.totalorder %s171, %s173
      %p177 = scmp.eq.s32.totalorder %s32, 0
      %p178 = por %p176, %p177
      %p179 = scmp.ne.s32.totalorder %s171, %s173
      %p180 = scmp.eq.s32.totalorder %s37, 1
      %p181 = por %p179, %p180
      %p182 = scmp.ne.s32.totalorder %s173, %s174
      %p183 = scmp.eq.s32.totalorder %s37, 0
      %p184 = por %p182, %p183
      %p185 = scmp.ne.s32.totalorder %s173, %s174
      %p186 = scmp.eq.s32.totalorder %s38, 1
      %p187 = por %p185, %p186
      %p189 = scmp.ne.s32.totalorder %s174, %s188
      %p190 = scmp.eq.s32.totalorder %s38, 0
      %p191 = por %p189, %p190
      %s193 = sadd.s32 %s192, 1
      %p196 = scmp.eq.s32.totalorder %s32, 1
      %p197 = scmp.ne.s32.totalorder %s192, %s194
      %p198 = scmp.eq.s32.totalorder %s32, 0
      %p199 = por %p197, %p198
      %p200 = scmp.ne.s32.totalorder %s192, %s194
      %p201 = scmp.eq.s32.totalorder %s37, 1
      %p202 = por %p200, %p201
      %p203 = scmp.ne.s32.totalorder %s194, %s195
      %p204 = scmp.eq.s32.totalorder %s37, 0
      %p205 = por %p203, %p204
      %p206 = scmp.ne.s32.totalorder %s194, %s195
      %p207 = scmp.eq.s32.totalorder %s38, 1
      %p208 = por %p206, %p207
      %p210 = scmp.ne.s32.totalorder %s195, %s209
      %p211 = scmp.eq.s32.totalorder %s38, 0
      %p212 = por %p210, %p211
      %s214 = sadd.s32 %s213, 1
      %p217 = scmp.eq.s32.totalorder %s32, 1
      %p218 = scmp.ne.s32.totalorder %s213, %s215
      %p219 = scmp.eq.s32.totalorder %s32, 0
      %p220 = por %p218, %p219
      %p221 = scmp.ne.s32.totalorder %s213, %s215
      %p222 = scmp.eq.s32.totalorder %s37, 1
      %p223 = por %p221, %p222
      %p224 = scmp.ne.s32.totalorder %s215, %s216
      %p225 = scmp.eq.s32.totalorder %s37, 0
      %p226 = por %p224, %p225
      %p227 = scmp.ne.s32.totalorder %s215, %s216
      %p228 = scmp.eq.s32.totalorder %s38, 1
      %p229 = por %p227, %p228
      %p231 = scmp.ne.s32.totalorder %s216, %s230
      %p232 = scmp.eq.s32.totalorder %s38, 0
      %p233 = por %p231, %p232
      %s235 = sadd.s32 %s234, 1
      %p238 = scmp.eq.s32.totalorder %s32, 1
      %p239 = scmp.ne.s32.totalorder %s234, %s236
      %p240 = scmp.eq.s32.totalorder %s32, 0
      %p241 = por %p239, %p240
      %p242 = scmp.ne.s32.totalorder %s234, %s236
      %p243 = scmp.eq.s32.totalorder %s37, 1
      %p244 = por %p242, %p243
      %p245 = scmp.ne.s32.totalorder %s236, %s237
      %p246 = scmp.eq.s32.totalorder %s37, 0
      %p247 = por %p245, %p246
      %p248 = scmp.ne.s32.totalorder %s236, %s237
      %p249 = scmp.eq.s32.totalorder %s38, 1
      %p250 = por %p248, %p249
      %p252 = scmp.ne.s32.totalorder %s237, %s251
      %p253 = scmp.eq.s32.totalorder %s38, 0
      %p254 = por %p252, %p253
      %s256 = sadd.s32 %s255, 1
      %p259 = scmp.eq.s32.totalorder %s32, 1
      %p260 = scmp.ne.s32.totalorder %s255, %s257
      %p261 = scmp.eq.s32.totalorder %s32, 0
      %p262 = por %p260, %p261
      %p263 = scmp.ne.s32.totalorder %s255, %s257
      %p264 = scmp.eq.s32.totalorder %s37, 1
      %p265 = por %p263, %p264
      %p266 = scmp.ne.s32.totalorder %s257, %s258
      %p267 = scmp.eq.s32.totalorder %s37, 0
      %p268 = por %p266, %p267
      %p269 = scmp.ne.s32.totalorder %s257, %s258
      %p270 = scmp.eq.s32.totalorder %s38, 1
      %p271 = por %p269, %p270
      %p273 = scmp.ne.s32.totalorder %s258, %s272
      %p274 = scmp.eq.s32.totalorder %s38, 0
      %p275 = por %p273, %p274
      %s277 = sadd.s32 %s276, 1
      %p280 = scmp.eq.s32.totalorder %s32, 1
      %p281 = scmp.ne.s32.totalorder %s276, %s278
      %p282 = scmp.eq.s32.totalorder %s32, 0
      %p283 = por %p281, %p282
      %p284 = scmp.ne.s32.totalorder %s276, %s278
      %p285 = scmp.eq.s32.totalorder %s37, 1
      %p286 = por %p284, %p285
      %p287 = scmp.ne.s32.totalorder %s278, %s279
      %p288 = scmp.eq.s32.totalorder %s37, 0
      %p289 = por %p287, %p288
      %p290 = scmp.ne.s32.totalorder %s278, %s279
      %p291 = scmp.eq.s32.totalorder %s38, 1
      %p292 = por %p290, %p291
      %p294 = scmp.ne.s32.totalorder %s279, %s293
      %p295 = scmp.eq.s32.totalorder %s38, 0
      %p296 = por %p294, %p295
      %s298 = sadd.s32 %s297, 1
      %p301 = scmp.eq.s32.totalorder %s32, 1
      %p302 = scmp.ne.s32.totalorder %s297, %s299
      %p303 = scmp.eq.s32.totalorder %s32, 0
      %p304 = por %p302, %p303
      %p305 = scmp.ne.s32.totalorder %s297, %s299
      %p306 = scmp.eq.s32.totalorder %s37, 1
      %p307 = por %p305, %p306
      %p308 = scmp.ne.s32.totalorder %s299, %s300
      %p309 = scmp.eq.s32.totalorder %s37, 0
      %p310 = por %p308, %p309
      %p311 = scmp.ne.s32.totalorder %s299, %s300
      %p312 = scmp.eq.s32.totalorder %s38, 1
      %p313 = por %p311, %p312
      %p315 = scmp.ne.s32.totalorder %s300, %s314
      %p316 = scmp.eq.s32.totalorder %s38, 0
      %p317 = por %p315, %p316
      %s319 = sadd.s32 %s318, 1
      %p322 = scmp.eq.s32.totalorder %s32, 1
      %p323 = scmp.ne.s32.totalorder %s318, %s320
      %p324 = scmp.eq.s32.totalorder %s32, 0
      %p325 = por %p323, %p324
      %p326 = scmp.ne.s32.totalorder %s318, %s320
      %p327 = scmp.eq.s32.totalorder %s37, 1
      %p328 = por %p326, %p327
      %p329 = scmp.ne.s32.totalorder %s320, %s321
      %p330 = scmp.eq.s32.totalorder %s37, 0
      %p331 = por %p329, %p330
      %p332 = scmp.ne.s32.totalorder %s320, %s321
      %p333 = scmp.eq.s32.totalorder %s38, 1
      %p334 = por %p332, %p333
      %p336 = scmp.ne.s32.totalorder %s321, %s335
      %p337 = scmp.eq.s32.totalorder %s38, 0
      %p338 = por %p336, %p337
      %s340 = sadd.s32 %s339, 1
      %p343 = scmp.eq.s32.totalorder %s32, 1
      %p344 = scmp.ne.s32.totalorder %s339, %s341
      %p345 = scmp.eq.s32.totalorder %s32, 0
      %p346 = por %p344, %p345
      %p347 = scmp.ne.s32.totalorder %s339, %s341
      %p348 = scmp.eq.s32.totalorder %s37, 1
      %p349 = por %p347, %p348
      %p350 = scmp.ne.s32.totalorder %s341, %s342
      %p351 = scmp.eq.s32.totalorder %s37, 0
      %p352 = por %p350, %p351
      %p353 = scmp.ne.s32.totalorder %s341, %s342
      %p354 = scmp.eq.s32.totalorder %s38, 1
      %p355 = por %p353, %p354
      %p357 = scmp.ne.s32.totalorder %s342, %s356
      %p358 = scmp.eq.s32.totalorder %s38, 0
      %p359 = por %p357, %p358
      %s361 = sadd.s32 %s360, 1
      %p364 = scmp.eq.s32.totalorder %s32, 1
      %p365 = scmp.ne.s32.totalorder %s360, %s362
      %p366 = scmp.eq.s32.totalorder %s32, 0
      %p367 = por %p365, %p366
      %p368 = scmp.ne.s32.totalorder %s360, %s362
      %p369 = scmp.eq.s32.totalorder %s37, 1
      %p370 = por %p368, %p369
      %p371 = scmp.ne.s32.totalorder %s362, %s363
      %p372 = scmp.eq.s32.totalorder %s37, 0
      %p373 = por %p371, %p372
      %p374 = scmp.ne.s32.totalorder %s362, %s363
      %p375 = scmp.eq.s32.totalorder %s38, 1
      %p376 = por %p374, %p375
      %p378 = scmp.ne.s32.totalorder %s363, %s377
      %p379 = scmp.eq.s32.totalorder %s38, 0
      %p380 = por %p378, %p379
      %s382 = sadd.s32 %s381, 1
      %p385 = scmp.eq.s32.totalorder %s32, 1
      %p386 = scmp.ne.s32.totalorder %s381, %s383
      %p387 = scmp.eq.s32.totalorder %s32, 0
      %p388 = por %p386, %p387
      %p389 = scmp.ne.s32.totalorder %s381, %s383
      %p390 = scmp.eq.s32.totalorder %s37, 1
      %p391 = por %p389, %p390
      %p392 = scmp.ne.s32.totalorder %s383, %s384
      %p393 = scmp.eq.s32.totalorder %s37, 0
      %p394 = por %p392, %p393
      %p395 = scmp.ne.s32.totalorder %s383, %s384
      %p396 = scmp.eq.s32.totalorder %s38, 1
      %p397 = por %p395, %p396
      %p399 = scmp.ne.s32.totalorder %s384, %s398
      %p400 = scmp.eq.s32.totalorder %s38, 0
      %p401 = por %p399, %p400
      %s403 = sadd.s32 %s402, 1
      %p406 = scmp.eq.s32.totalorder %s32, 1
      %p407 = scmp.ne.s32.totalorder %s402, %s404
      %p408 = scmp.eq.s32.totalorder %s32, 0
      %p409 = por %p407, %p408
      %p410 = scmp.ne.s32.totalorder %s402, %s404
      %p411 = scmp.eq.s32.totalorder %s37, 1
      %p412 = por %p410, %p411
      %p413 = scmp.ne.s32.totalorder %s404, %s405
      %p414 = scmp.eq.s32.totalorder %s37, 0
      %p415 = por %p413, %p414
      %p416 = scmp.ne.s32.totalorder %s404, %s405
      %p417 = scmp.eq.s32.totalorder %s38, 1
      %p418 = por %p416, %p417
      %p420 = scmp.ne.s32.totalorder %s405, %s419
      %p421 = scmp.eq.s32.totalorder %s38, 0
      %p422 = por %p420, %p421
      %s423 = ssub.s32 %s32, %s39
      %p424 = scmp.eq.s32.totalorder %s423, 0
      %s426 = sadd.s32 %s425, 1
      %s427 = scalar_select %p424, %s425, %s426
      %p430 = pneg %p424
      %p431 = scmp.eq.s32.totalorder %s32, 1
      %p432 = por %p430, %p431
      %p433 = scmp.ne.s32.totalorder %s425, %s428
      %p434 = scmp.eq.s32.totalorder %s32, 0
      %p435 = por %p433, %p434
      %p436 = scmp.ne.s32.totalorder %s425, %s428
      %p437 = scmp.eq.s32.totalorder %s37, 1
      %p438 = por %p436, %p437
      %p439 = scmp.ne.s32.totalorder %s428, %s429
      %p440 = scmp.eq.s32.totalorder %s37, 0
      %p441 = por %p439, %p440
      %p442 = scmp.ne.s32.totalorder %s428, %s429
      %p443 = scmp.eq.s32.totalorder %s38, 1
      %p444 = por %p442, %p443
      %p446 = scmp.ne.s32.totalorder %s429, %s445
      %p447 = scmp.eq.s32.totalorder %s38, 0
      %p448 = por %p446, %p447
      %s449 = ssub.s32 %s32, %s39
      %p450 = scmp.eq.s32.totalorder %s449, 0
      %s452 = sadd.s32 %s451, 1
      %s453 = scalar_select %p450, %s451, %s452
      %p456 = pneg %p450
      %p457 = scmp.eq.s32.totalorder %s32, 1
      %p458 = por %p456, %p457
      %p459 = scmp.ne.s32.totalorder %s451, %s454
      %p460 = scmp.eq.s32.totalorder %s32, 0
      %p461 = por %p459, %p460
      %p462 = scmp.ne.s32.totalorder %s451, %s454
      %p463 = scmp.eq.s32.totalorder %s37, 1
      %p464 = por %p462, %p463
      %p465 = scmp.ne.s32.totalorder %s454, %s455
      %p466 = scmp.eq.s32.totalorder %s37, 0
      %p467 = por %p465, %p466
      %p468 = scmp.ne.s32.totalorder %s454, %s455
      %p469 = scmp.eq.s32.totalorder %s38, 1
      %p470 = por %p468, %p469
      %p472 = scmp.ne.s32.totalorder %s455, %s471
      %p473 = scmp.eq.s32.totalorder %s38, 0
      %p474 = por %p472, %p473
      %p475 = scmp.le.s32.totalorder 1, %s32
      %p476 = scmp.lt.s32.totalorder %s32, 3
      %p477 = pnand %p475, %p476
      %p478 = pneg %p477
      // Predicated region
      $region9: #{swin_vision_forward.1} parent=5 // pred_check
        _
      $region10: #{swin_vision_forward.1} parent=5 // pred_check_branch
        %480 = sbr.rel (%p477) target = $region12
      $region11: #{swin_vision_forward.1} parent=5 // pred_region
        %s481 = ssub.s32 %s32, 1
        // Predicated region
        $region13: #{swin_vision_forward.1} parent=11 // pred_check
          %p482 = pneg %p79
        $region14: #{swin_vision_forward.1} parent=11 // pred_check_branch
          %484 = sbr.rel (%p482) target = $region16
        $region15: #{swin_vision_forward.1} parent=11 // pred_region
          _
        $region16: #{swin_vision_forward.1} parent=11 // pred_fallthru
          _
        // Predicated region
        $region17: #{swin_vision_forward.1} parent=11 // pred_check
          %p485 = pneg %p100
        $region18: #{swin_vision_forward.1} parent=11 // pred_check_branch
          %487 = sbr.rel (%p485) target = $region20
        $region19: #{swin_vision_forward.1} parent=11 // pred_region
          _
        $region20: #{swin_vision_forward.1} parent=11 // pred_fallthru
          _
        // Predicated region
        $region21: #{swin_vision_forward.1} parent=11 // pred_check
          %p488 = pneg %p121
        $region22: #{swin_vision_forward.1} parent=11 // pred_check_branch
          %490 = sbr.rel (%p488) target = $region24
        $region23: #{swin_vision_forward.1} parent=11 // pred_region
          _
        $region24: #{swin_vision_forward.1} parent=11 // pred_fallthru
          _
        // Predicated region
        $region25: #{swin_vision_forward.1} parent=11 // pred_check
          %p491 = pneg %p142
        $region26: #{swin_vision_forward.1} parent=11 // pred_check_branch
          %493 = sbr.rel (%p491) target = $region28
        $region27: #{swin_vision_forward.1} parent=11 // pred_region
          _
        $region28: #{swin_vision_forward.1} parent=11 // pred_fallthru
          _
        // Predicated region
        $region29: #{swin_vision_forward.1} parent=11 // pred_check
          %p494 = pneg %p163
        $region30: #{swin_vision_forward.1} parent=11 // pred_check_branch
          %496 = sbr.rel (%p494) target = $region32
        $region31: #{swin_vision_forward.1} parent=11 // pred_region
          _
        $region32: #{swin_vision_forward.1} parent=11 // pred_fallthru
          _
        // Predicated region
        $region33: #{swin_vision_forward.1} parent=11 // pred_check
          %p497 = pneg %p184
        $region34: #{swin_vision_forward.1} parent=11 // pred_check_branch
          %499 = sbr.rel (%p497) target = $region36
        $region35: #{swin_vision_forward.1} parent=11 // pred_region
          _
        $region36: #{swin_vision_forward.1} parent=11 // pred_fallthru
          _
        // Predicated region
        $region37: #{swin_vision_forward.1} parent=11 // pred_check
          %p500 = pneg %p205
        $region38: #{swin_vision_forward.1} parent=11 // pred_check_branch
          %502 = sbr.rel (%p500) target = $region40
        $region39: #{swin_vision_forward.1} parent=11 // pred_region
          _
        $region40: #{swin_vision_forward.1} parent=11 // pred_fallthru
          _
        // Predicated region
        $region41: #{swin_vision_forward.1} parent=11 // pred_check
          %p503 = pneg %p226
        $region42: #{swin_vision_forward.1} parent=11 // pred_check_branch
          %505 = sbr.rel (%p503) target = $region44
        $region43: #{swin_vision_forward.1} parent=11 // pred_region
          _
        $region44: #{swin_vision_forward.1} parent=11 // pred_fallthru
          _
        // Predicated region
        $region45: #{swin_vision_forward.1} parent=11 // pred_check
          %p506 = pneg %p247
        $region46: #{swin_vision_forward.1} parent=11 // pred_check_branch
          %508 = sbr.rel (%p506) target = $region48
        $region47: #{swin_vision_forward.1} parent=11 // pred_region
          _
        $region48: #{swin_vision_forward.1} parent=11 // pred_fallthru
          _
        // Predicated region
        $region49: #{swin_vision_forward.1} parent=11 // pred_check
          %p509 = pneg %p268
        $region50: #{swin_vision_forward.1} parent=11 // pred_check_branch
          %511 = sbr.rel (%p509) target = $region52
        $region51: #{swin_vision_forward.1} parent=11 // pred_region
          _
        $region52: #{swin_vision_forward.1} parent=11 // pred_fallthru
          _
        // Predicated region
        $region53: #{swin_vision_forward.1} parent=11 // pred_check
          %p512 = pneg %p289
        $region54: #{swin_vision_forward.1} parent=11 // pred_check_branch
          %514 = sbr.rel (%p512) target = $region56
        $region55: #{swin_vision_forward.1} parent=11 // pred_region
          _
        $region56: #{swin_vision_forward.1} parent=11 // pred_fallthru
          _
        // Predicated region
        $region57: #{swin_vision_forward.1} parent=11 // pred_check
          %p515 = pneg %p310
        $region58: #{swin_vision_forward.1} parent=11 // pred_check_branch
          %517 = sbr.rel (%p515) target = $region60
        $region59: #{swin_vision_forward.1} parent=11 // pred_region
          _
        $region60: #{swin_vision_forward.1} parent=11 // pred_fallthru
          _
        // Predicated region
        $region61: #{swin_vision_forward.1} parent=11 // pred_check
          %p518 = pneg %p331
        $region62: #{swin_vision_forward.1} parent=11 // pred_check_branch
          %520 = sbr.rel (%p518) target = $region64
        $region63: #{swin_vision_forward.1} parent=11 // pred_region
          _
        $region64: #{swin_vision_forward.1} parent=11 // pred_fallthru
          _
        // Predicated region
        $region65: #{swin_vision_forward.1} parent=11 // pred_check
          %p521 = pneg %p352
        $region66: #{swin_vision_forward.1} parent=11 // pred_check_branch
          %523 = sbr.rel (%p521) target = $region68
        $region67: #{swin_vision_forward.1} parent=11 // pred_region
          _
        $region68: #{swin_vision_forward.1} parent=11 // pred_fallthru
          _
        // Predicated region
        $region69: #{swin_vision_forward.1} parent=11 // pred_check
          %p524 = pneg %p373
        $region70: #{swin_vision_forward.1} parent=11 // pred_check_branch
          %526 = sbr.rel (%p524) target = $region72
        $region71: #{swin_vision_forward.1} parent=11 // pred_region
          _
        $region72: #{swin_vision_forward.1} parent=11 // pred_fallthru
          _
        // Predicated region
        $region73: #{swin_vision_forward.1} parent=11 // pred_check
          %p527 = pneg %p394
        $region74: #{swin_vision_forward.1} parent=11 // pred_check_branch
          %529 = sbr.rel (%p527) target = $region76
        $region75: #{swin_vision_forward.1} parent=11 // pred_region
          _
        $region76: #{swin_vision_forward.1} parent=11 // pred_fallthru
          _
        // Predicated region
        $region77: #{swin_vision_forward.1} parent=11 // pred_check
          %p530 = pneg %p415
        $region78: #{swin_vision_forward.1} parent=11 // pred_check_branch
          %532 = sbr.rel (%p530) target = $region80
        $region79: #{swin_vision_forward.1} parent=11 // pred_region
          _
        $region80: #{swin_vision_forward.1} parent=11 // pred_fallthru
          _
      $region12: #{swin_vision_forward.1} parent=5 // pred_fallthru
        _
      %p533 = scmp.lt.s32.totalorder %s32, 2
      // Predicated region
      $region81: #{swin_vision_forward.1} parent=5 // pred_check
        %p534 = pneg %p533
      $region82: #{swin_vision_forward.1} parent=5 // pred_check_branch
        %536 = sbr.rel (%p534) target = $region84
      $region83: #{swin_vision_forward.1} parent=5 // pred_region
        // Predicated region
        $region85: #{swin_vision_forward.1} parent=83 // pred_check
          %p537 = pneg %p52
        $region86: #{swin_vision_forward.1} parent=83 // pred_check_branch
          %539 = sbr.rel (%p537) target = $region88
        $region87: #{swin_vision_forward.1} parent=83 // pred_region
          %s540 = smul.u32 2, %s32
          %p541 = scmp.lt.s32.totalorder %s540, 3
          %s542 = scalar_select %p541, %s540, 3
          %s543 = smul.addr %s542, 4
          %s544 = scalar_lea.vmem %s0, %s543
          %s545 = smul.u32 2, %s32
        $region88: #{swin_vision_forward.1} parent=83 // pred_fallthru
          _
      $region84: #{swin_vision_forward.1} parent=5 // pred_fallthru
        _
      %p546 = scmp.le.s32.totalorder 1, %s32
      %p547 = scmp.lt.s32.totalorder %s32, 3
      %p548 = pnand %p546, %p547
      %p549 = pneg %p548
      // Predicated region
      $region89: #{swin_vision_forward.1} parent=5 // pred_check
        _
      $region90: #{swin_vision_forward.1} parent=5 // pred_check_branch
        %551 = sbr.rel (%p548) target = $region92
      $region91: #{swin_vision_forward.1} parent=5 // pred_region
        %s552 = ssub.s32 %s32, 1
        %s553 = smul.u32 2, %s37
        %p554 = scmp.lt.s32.totalorder %s553, 3
        %s555 = scalar_select %p554, %s553, 3
        %s556 = smul.addr %s555, 4
        %s557 = scalar_lea.vmem %s0, %s556
        %p558 = pneg %p58
        %p559 = pneg %p55
        %p560 = pneg %p79
        %p561 = pneg %p76
        %p562 = pneg %p100
        %p563 = pneg %p97
        %p564 = pneg %p121
        %p565 = pneg %p118
        %p566 = pneg %p142
        %p567 = pneg %p139
        %p568 = pneg %p163
        %p569 = pneg %p160
        %p570 = pneg %p184
        %p571 = pneg %p181
        %p572 = pneg %p205
        %p573 = pneg %p202
        %p574 = pneg %p226
        %p575 = pneg %p223
        %p576 = pneg %p247
        %p577 = pneg %p244
        %p578 = pneg %p268
        %p579 = pneg %p265
        %p580 = pneg %p289
        %p581 = pneg %p286
        %p582 = pneg %p310
        %p583 = pneg %p307
        %p584 = pneg %p331
        %p585 = pneg %p328
        %p586 = pneg %p352
        %p587 = pneg %p349
        %p588 = pneg %p373
        %p589 = pneg %p370
        %p590 = pneg %p394
        %p591 = pneg %p391
        %p592 = pneg %p415
        %p593 = pneg %p412
        %p594 = pneg %p441
        %p595 = pneg %p438
        %s596 = sand.u32 %s428, 1
        %s597 = scalar_lea.sflag [#allocation3], %s596
        %s598 = sand.u32 %s428, 1
        %s599 = smul.addr %s598, 16
        %s600 = scalar_lea.vmem [#allocation2], %s599
        %p601 = pneg %p467
        %p602 = pneg %p464
        %s603 = sand.u32 %s454, 1
        %s604 = scalar_lea.sflag [#allocation5], %s603
        %s605 = sand.u32 %s454, 1
        %s606 = scalar_lea.vmem [#allocation4], %s605
        %s607 = smul.u32 2, %s37
        %p608 = scmp.lt.s32.totalorder %s607, 3
        %s609 = scalar_select %p608, %s607, 3
        %s610 = smul.addr %s609, 4
        %s611 = scalar_lea.vmem %s0, %s610
        %s612 = smul.u32 2, %s37
        %s613 = smul.u32 2, %s37
        %v615 = vld [vmem:[%s611] sm:$0xf]
        %v616 = vld [vmem:[%s611 + $0x4] sm:$0xf]
        %v617 = vld [vmem:[%s1] sm:$0xf]
        %v618 = vld [vmem:[%s1 + $0x4] sm:$0xf]
        %v619 = vld [vmem:[%s1 + $0x8] sm:$0xf]
        %v620 = vld [vmem:[%s1 + $0xc] sm:$0xf]
        %v621 = vld [vmem:[%s1 + $0x10] sm:$0xf]
        %v622 = vld [vmem:[%s1 + $0x14] sm:$0xf]
        %v623 = vld [vmem:[%s2] sm:$0x1]
        %v625 = vlaneseq
        %v626 = vshrl.u32 %v625, 7
        %v627 = vsub.s32 0, %v626
        %v628 = vrot.slane %v623, %v627
        %v632 = vunpack.c.l.b16 %v615
        %v633 = vunpack.c.l.b16 %v616
        %v634 = vpack.c.b16 %v633, %v632
        %v641 = vunpack.c.l.b16 %v617
        %v642 = vunpack.c.l.b16 %v618
        %v643 = vunpack.c.l.b16 %v619
        %v644 = vunpack.c.l.b16 %v620
        %v645 = vunpack.c.l.b16 %v621
        %v646 = vunpack.c.l.b16 %v622
        %v647 = vpack.c.b16 %v642, %v641
        %v648 = vpack.c.b16 %v644, %v643
        %v649 = vpack.c.b16 %v646, %v645
        %vm653 = vcmask 392192
        %v655 = vsel %vm653, %v634, 0
        %657 = vmatprep.subr.bf16.mxu0 0
        %658 = vmatpush1.bf16.msra.mxu0 0
        %659 = vmatprep.subr.bf16.mxu0 0
        %660 = vmatpush1.bf16.msra.mxu0 0
        %661 = vmatprep.subr.bf16.mxu0 0
        %662 = vmatpush1.bf16.msra.mxu0 0
        %663 = vmatprep.subr.bf16.mxu0 0
        %664 = vmatpush1.bf16.msra.mxu0 0
        %665 = vmatprep.subr.bf16.mxu0 0
        %666 = vmatpush1.bf16.msra.mxu0 0
        %667 = vmatprep.subr.bf16.mxu0 0
        %668 = vmatpush1.bf16.msra.mxu0 %v649
        %669 = vmatprep.subr.bf16.mxu0 0
        %670 = vmatpush1.bf16.msra.mxu0 %v648
        %671 = vmatprep.subr.bf16.mxu0 0
        %672 = vmatpush1.bf16.msra.mxu0 %v647
        %673 = vmatprep.subr.bf16.mxu0 0
        %674 = vmatpush2.bf16.msra.mxu0 0
        %675 = vmatprep.subr.bf16.mxu0 0
        %676 = vmatpush2.bf16.msra.mxu0 0
        %677 = vmatprep.subr.bf16.mxu0 0
        %678 = vmatpush2.bf16.msra.mxu0 0
        %679 = vmatprep.subr.bf16.mxu0 0
        %680 = vmatpush2.bf16.msra.mxu0 0
        %681 = vmatprep.subr.bf16.mxu0 0
        %682 = vmatpush2.bf16.msra.mxu0 0
        %683 = vmatprep.subr.bf16.mxu0 0
        %684 = vmatpush2.bf16.msra.mxu0 0
        %685 = vmatprep.subr.bf16.mxu0 0
        %686 = vmatpush2.bf16.msra.mxu0 0
        %687 = vmatprep.subr.bf16.mxu0 0
        %688 = vmatpush2.bf16.msra.mxu0 0
        %689 = vmatprep.mubr.bf16.mxu0 0
        %690 = vmatmul.mubr.bf16.gmra.mxu0 %v655
        %v691 = vpop.f32.mrf.mxu0
        %v692 = vadd.f32 %v628, %v691
        %v693 = vpop.f32.mrf.mxu0
        %v694 = vpop.f32.mrf.mxu0
        %v695 = vadd.f32 %v628, %v694
        %v696 = vpop.f32.mrf.mxu0
        %697 = vdwg.mxu0
        %v698 = vld [vmem:[%s3] sm:$0x1]
        %v699 = vld [vmem:[%s4] sm:$0x1]
        %vm700 = vcmask 261120
        %v701 = vsel %vm700, %v692, 0.0
        %702 = vadd.xlane.f32.xlu0 %v701
        %v703 = vpop.xlane.xlu0 %702
        %v704 = vsel %vm700, %v695, 0.0
        %705 = vadd.xlane.f32.xlu0 %v704
        %v706 = vpop.xlane.xlu0 %705
        %v707 = vrcp.pop 32.0
        %v708 = vmul.f32 %v703, %v707
        %v709 = vmul.f32 %v706, %v707
        %v710 = vsub.f32 %v692, %v708
        %v711 = vsub.f32 %v695, %v709
        %v712 = vmul.f32 %v710, %v710
        %v713 = vmul.f32 %v711, %v711
        %v714 = vsel %vm700, %v712, 0.0
        %715 = vadd.xlane.f32.xlu0 %v714
        %v716 = vpop.xlane.xlu0 %715
        %v717 = vsel %vm700, %v713, 0.0
        %718 = vadd.xlane.f32.xlu0 %v717
        %v719 = vpop.xlane.xlu0 %718
        %v720 = vmul.f32 %v716, %v707
        %v721 = vmul.f32 %v719, %v707
        %v722 = vadd.f32 %v720, 1e-05
        %v723 = vadd.f32 %v721, 1e-05
        %v724 = vrsqrt.pop %v722
        %v725 = vrsqrt.pop %v723
        %v726 = vmul.f32 %v710, %v724
        %v727 = vmul.f32 %v711, %v725
        %v729 = vlaneseq
        %v730 = vshrl.u32 %v729, 7
        %v731 = vsub.s32 0, %v730
        %v732 = vrot.slane %v698, %v731
        %v734 = vmul.f32 %v726, %v732
        %v735 = vmul.f32 %v727, %v732
        %v737 = vlaneseq
        %v738 = vshrl.u32 %v737, 7
        %v739 = vsub.s32 0, %v738
        %v740 = vrot.slane %v699, %v739
        %v742 = vadd.f32 %v734, %v740
        %v743 = vadd.f32 %v735, %v740
        %v744 = vpack.c.bf16 %v743, %v742
        %v745 = vld [vmem:[%s5] sm:$0xf]
        %v746 = vld [vmem:[%s5 + $0x4] sm:$0xf]
        %v747 = vld [vmem:[%s5 + $0x8] sm:$0xf]
        %v748 = vld [vmem:[%s5 + $0xc] sm:$0xf]
        %v749 = vld [vmem:[%s6] sm:$0x1]
        %v751 = vlaneseq
        %v752 = vshrl.u32 %v751, 7
        %v753 = vsub.s32 0, %v752
        %v754 = vrot.slane %v749, %v753
        %v760 = vunpack.c.l.b16 %v745
        %v761 = vunpack.c.l.b16 %v746
        %v762 = vunpack.c.l.b16 %v747
        %v763 = vunpack.c.l.b16 %v748
        %v764 = vpack.c.b16 %v761, %v760
        %v765 = vpack.c.b16 %v763, %v762
        %v769 = vsel %vm700, %v744, 0
        %771 = vmatprep.subr.bf16.mxu0 0
        %772 = vmatpush1.bf16.msra.mxu0 0
        %773 = vmatprep.subr.bf16.mxu0 0
        %774 = vmatpush1.bf16.msra.mxu0 0
        %775 = vmatprep.subr.bf16.mxu0 0
        %776 = vmatpush1.bf16.msra.mxu0 0
        %777 = vmatprep.subr.bf16.mxu0 0
        %778 = vmatpush1.bf16.msra.mxu0 0
        %779 = vmatprep.subr.bf16.mxu0 0
        %780 = vmatpush1.bf16.msra.mxu0 0
        %781 = vmatprep.subr.bf16.mxu0 0
        %782 = vmatpush1.bf16.msra.mxu0 0
        %783 = vmatprep.subr.bf16.mxu0 0
        %784 = vmatpush1.bf16.msra.mxu0 %v765
        %785 = vmatprep.subr.bf16.mxu0 0
        %786 = vmatpush1.bf16.msra.mxu0 %v764
        %787 = vmatprep.subr.bf16.mxu0 0
        %788 = vmatpush2.bf16.msra.mxu0 0
        %789 = vmatprep.subr.bf16.mxu0 0
        %790 = vmatpush2.bf16.msra.mxu0 0
        %791 = vmatprep.subr.bf16.mxu0 0
        %792 = vmatpush2.bf16.msra.mxu0 0
        %793 = vmatprep.subr.bf16.mxu0 0
        %794 = vmatpush2.bf16.msra.mxu0 0
        %795 = vmatprep.subr.bf16.mxu0 0
        %796 = vmatpush2.bf16.msra.mxu0 0
        %797 = vmatprep.subr.bf16.mxu0 0
        %798 = vmatpush2.bf16.msra.mxu0 0
        %799 = vmatprep.subr.bf16.mxu0 0
        %800 = vmatpush2.bf16.msra.mxu0 0
        %801 = vmatprep.subr.bf16.mxu0 0
        %802 = vmatpush2.bf16.msra.mxu0 0
        %803 = vmatprep.mubr.bf16.mxu0 0
        %804 = vmatmul.mubr.bf16.gmra.mxu0 %v769
        %v805 = vpop.f32.mrf.mxu0
        %v806 = vadd.f32 %v754, %v805
        %v807 = vpop.f32.mrf.mxu0
        %v808 = vpop.f32.mrf.mxu0
        %v809 = vadd.f32 %v754, %v808
        %v810 = vpop.f32.mrf.mxu0
        %811 = vdwg.mxu0
        %v812 = vpack.c.bf16 %v809, %v806
        %v813 = vld [vmem:[%s7] sm:$0xff]
        %v814 = vld [vmem:[%s7 + $0x8] sm:$0xff]
        %816 = vrot.lane.b32.xlu0 %v812, 96
        %v817 = vpop.permute.xlu0 %816
        %vm818 = vcmask 130048
        %v820 = vsel %vm818, %v812, 0
        %v823 = vsel %vm818, %v817, 0
        %825 = vmatprep.subr.bf16.mxu0 0
        %826 = vmatpush1.bf16.xpose.msra.mxu0 0
        %827 = vmatprep.subr.bf16.mxu0 0
        %828 = vmatpush1.bf16.xpose.msra.mxu0 0
        %829 = vmatprep.subr.bf16.mxu0 0
        %830 = vmatpush1.bf16.xpose.msra.mxu0 0
        %831 = vmatprep.subr.bf16.mxu0 0
        %832 = vmatpush1.bf16.xpose.msra.mxu0 0
        %833 = vmatprep.subr.bf16.mxu0 0
        %834 = vmatpush1.bf16.xpose.msra.mxu0 0
        %835 = vmatprep.subr.bf16.mxu0 0
        %836 = vmatpush1.bf16.xpose.msra.mxu0 0
        %837 = vmatprep.subr.bf16.mxu0 0
        %838 = vmatpush1.bf16.xpose.msra.mxu0 0
        %839 = vmatprep.subr.bf16.mxu0 0
        %840 = vmatpush1.bf16.xpose.msra.mxu0 %v823
        %841 = vmatprep.subr.bf16.mxu0 0
        %842 = vmatpush2.bf16.xpose.msra.mxu0 0
        %843 = vmatprep.subr.bf16.mxu0 0
        %844 = vmatpush2.bf16.xpose.msra.mxu0 0
        %845 = vmatprep.subr.bf16.mxu0 0
        %846 = vmatpush2.bf16.xpose.msra.mxu0 0
        %847 = vmatprep.subr.bf16.mxu0 0
        %848 = vmatpush2.bf16.xpose.msra.mxu0 0
        %849 = vmatprep.subr.bf16.mxu0 0
        %850 = vmatpush2.bf16.xpose.msra.mxu0 0
        %851 = vmatprep.subr.bf16.mxu0 0
        %852 = vmatpush2.bf16.xpose.msra.mxu0 0
        %853 = vmatprep.subr.bf16.mxu0 0
        %854 = vmatpush2.bf16.xpose.msra.mxu0 0
        %855 = vmatprep.subr.bf16.mxu0 0
        %856 = vmatpush2.bf16.xpose.msra.mxu0 0
        %857 = vmatprep.mubr.bf16.mxu0 0
        %858 = vmatmul.mubr.bf16.gmra.mxu0 %v820
        %v859 = vpop.f32.mrf.mxu0
        %v860 = vadd.f32 %v813, %v859
        %v861 = vpop.f32.mrf.mxu0
        %v862 = vpop.f32.mrf.mxu0
        %v863 = vadd.f32 %v814, %v862
        %v864 = vpop.f32.mrf.mxu0
        %865 = vdwg.mxu0
        %v866 = vsel %vm818, %v860, -inf
        %867 = vmax.xlane.f32.xlu0 %v866
        %v868 = vpop.xlane.xlu0 %867
        %v869 = vsel %vm818, %v863, -inf
        %870 = vmax.xlane.f32.xlu0 %v869
        %v871 = vpop.xlane.xlu0 %870
        %v872 = vsub.f32 %v860, %v868
        %v873 = vsub.f32 %v863, %v871
        %v874 = vmul.f32 %v872, 1.442695
        %v875 = vpow.pop %v874
        %v876 = vmul.f32 %v873, 1.442695
        %v877 = vpow.pop %v876
        %v878 = vsel %vm818, %v875, 0.0
        %879 = vadd.xlane.f32.xlu0 %v878
        %v880 = vpop.xlane.xlu0 %879
        %v881 = vsel %vm818, %v877, 0.0
        %882 = vadd.xlane.f32.xlu0 %v881
        %v883 = vpop.xlane.xlu0 %882
        %v884 = vrcp.pop %v880
        %v885 = vrcp.pop %v883
        %v886 = vmul.f32 %v875, %v884
        %v887 = vmul.f32 %v877, %v885
        %v888 = vpack.c.bf16 %v887, %v886
        %889 = vrot.lane.b32.xlu0 %v812, 64
        %v890 = vpop.permute.xlu0 %889
        %v893 = vsel %vm818, %v888, 0
        %895 = vmatprep.subr.bf16.mxu0 0
        %896 = vmatpush1.bf16.msra.mxu0 0
        %897 = vmatprep.subr.bf16.mxu0 0
        %898 = vmatpush1.bf16.msra.mxu0 0
        %899 = vmatprep.subr.bf16.mxu0 0
        %900 = vmatpush1.bf16.msra.mxu0 0
        %901 = vmatprep.subr.bf16.mxu0 0
        %902 = vmatpush1.bf16.msra.mxu0 0
        %903 = vmatprep.subr.bf16.mxu0 0
        %904 = vmatpush1.bf16.msra.mxu0 0
        %905 = vmatprep.subr.bf16.mxu0 0
        %906 = vmatpush1.bf16.msra.mxu0 0
        %907 = vmatprep.subr.bf16.mxu0 0
        %908 = vmatpush1.bf16.msra.mxu0 0
        %909 = vmatprep.subr.bf16.mxu0 0
        %910 = vmatpush1.bf16.msra.mxu0 %v890
        %911 = vmatprep.subr.bf16.mxu0 0
        %912 = vmatpush2.bf16.msra.mxu0 0
        %913 = vmatprep.subr.bf16.mxu0 0
        %914 = vmatpush2.bf16.msra.mxu0 0
        %915 = vmatprep.subr.bf16.mxu0 0
        %916 = vmatpush2.bf16.msra.mxu0 0
        %917 = vmatprep.subr.bf16.mxu0 0
        %918 = vmatpush2.bf16.msra.mxu0 0
        %919 = vmatprep.subr.bf16.mxu0 0
        %920 = vmatpush2.bf16.msra.mxu0 0
        %921 = vmatprep.subr.bf16.mxu0 0
        %922 = vmatpush2.bf16.msra.mxu0 0
        %923 = vmatprep.subr.bf16.mxu0 0
        %924 = vmatpush2.bf16.msra.mxu0 0
        %925 = vmatprep.subr.bf16.mxu0 0
        %926 = vmatpush2.bf16.msra.mxu0 0
        %927 = vmatprep.mubr.bf16.mxu0 0
        %928 = vmatmul.mubr.bf16.gmra.mxu0 %v893
        %v929 = vpop.f32.mrf.mxu0
        %v930 = vadd.f32 0.0, %v929
        %v931 = vpop.f32.mrf.mxu0
        %v932 = vpop.f32.mrf.mxu0
        %v933 = vadd.f32 0.0, %v932
        %v934 = vpop.f32.mrf.mxu0
        %935 = vdwg.mxu0
        %s936 = scalar_lea.vmem %s7, 16
        %v937 = vld [vmem:[%s936] sm:$0xff]
        %v938 = vld [vmem:[%s936 + $0x8] sm:$0xff]
        %939 = vrot.lane.b32.xlu0 %v812, 112
        %v940 = vpop.permute.xlu0 %939
        %941 = vrot.lane.b32.xlu0 %v812, 80
        %v942 = vpop.permute.xlu0 %941
        %v944 = vsel %vm818, %v940, 0
        %v947 = vsel %vm818, %v942, 0
        %949 = vmatprep.subr.bf16.mxu0 0
        %950 = vmatpush1.bf16.xpose.msra.mxu0 0
        %951 = vmatprep.subr.bf16.mxu0 0
        %952 = vmatpush1.bf16.xpose.msra.mxu0 0
        %953 = vmatprep.subr.bf16.mxu0 0
        %954 = vmatpush1.bf16.xpose.msra.mxu0 0
        %955 = vmatprep.subr.bf16.mxu0 0
        %956 = vmatpush1.bf16.xpose.msra.mxu0 0
        %957 = vmatprep.subr.bf16.mxu0 0
        %958 = vmatpush1.bf16.xpose.msra.mxu0 0
        %959 = vmatprep.subr.bf16.mxu0 0
        %960 = vmatpush1.bf16.xpose.msra.mxu0 0
        %961 = vmatprep.subr.bf16.mxu0 0
        %962 = vmatpush1.bf16.xpose.msra.mxu0 0
        %963 = vmatprep.subr.bf16.mxu0 0
        %964 = vmatpush1.bf16.xpose.msra.mxu0 %v947
        %965 = vmatprep.subr.bf16.mxu0 0
        %966 = vmatpush2.bf16.xpose.msra.mxu0 0
        %967 = vmatprep.subr.bf16.mxu0 0
        %968 = vmatpush2.bf16.xpose.msra.mxu0 0
        %969 = vmatprep.subr.bf16.mxu0 0
        %970 = vmatpush2.bf16.xpose.msra.mxu0 0
        %971 = vmatprep.subr.bf16.mxu0 0
        %972 = vmatpush2.bf16.xpose.msra.mxu0 0
        %973 = vmatprep.subr.bf16.mxu0 0
        %974 = vmatpush2.bf16.xpose.msra.mxu0 0
        %975 = vmatprep.subr.bf16.mxu0 0
        %976 = vmatpush2.bf16.xpose.msra.mxu0 0
        %977 = vmatprep.subr.bf16.mxu0 0
        %978 = vmatpush2.bf16.xpose.msra.mxu0 0
        %979 = vmatprep.subr.bf16.mxu0 0
        %980 = vmatpush2.bf16.xpose.msra.mxu0 0
        %981 = vmatprep.mubr.bf16.mxu0 0
        %982 = vmatmul.mubr.bf16.gmra.mxu0 %v944
        %v983 = vpop.f32.mrf.mxu0
        %v984 = vadd.f32 %v937, %v983
        %v985 = vpop.f32.mrf.mxu0
        %v986 = vpop.f32.mrf.mxu0
        %v987 = vadd.f32 %v938, %v986
        %v988 = vpop.f32.mrf.mxu0
        %989 = vdwg.mxu0
        %v990 = vsel %vm818, %v984, -inf
        %991 = vmax.xlane.f32.xlu0 %v990
        %v992 = vpop.xlane.xlu0 %991
        %v993 = vsel %vm818, %v987, -inf
        %994 = vmax.xlane.f32.xlu0 %v993
        %v995 = vpop.xlane.xlu0 %994
        %v996 = vsub.f32 %v984, %v992
        %v997 = vsub.f32 %v987, %v995
        %v998 = vmul.f32 %v996, 1.442695
        %v999 = vpow.pop %v998
        %v1000 = vmul.f32 %v997, 1.442695
        %v1001 = vpow.pop %v1000
        %v1002 = vsel %vm818, %v999, 0.0
        %1003 = vadd.xlane.f32.xlu0 %v1002
        %v1004 = vpop.xlane.xlu0 %1003
        %v1005 = vsel %vm818, %v1001, 0.0
        %1006 = vadd.xlane.f32.xlu0 %v1005
        %v1007 = vpop.xlane.xlu0 %1006
        %v1008 = vrcp.pop %v1004
        %v1009 = vrcp.pop %v1007
        %v1010 = vmul.f32 %v999, %v1008
        %v1011 = vmul.f32 %v1001, %v1009
        %v1012 = vpack.c.bf16 %v1011, %v1010
        %1013 = vrot.lane.b32.xlu0 %v812, 48
        %v1014 = vpop.permute.xlu0 %1013
        %v1017 = vsel %vm818, %v1012, 0
        %1019 = vmatprep.subr.bf16.mxu0 0
        %1020 = vmatpush1.bf16.msra.mxu0 0
        %1021 = vmatprep.subr.bf16.mxu0 0
        %1022 = vmatpush1.bf16.msra.mxu0 0
        %1023 = vmatprep.subr.bf16.mxu0 0
        %1024 = vmatpush1.bf16.msra.mxu0 0
        %1025 = vmatprep.subr.bf16.mxu0 0
        %1026 = vmatpush1.bf16.msra.mxu0 0
        %1027 = vmatprep.subr.bf16.mxu0 0
        %1028 = vmatpush1.bf16.msra.mxu0 0
        %1029 = vmatprep.subr.bf16.mxu0 0
        %1030 = vmatpush1.bf16.msra.mxu0 0
        %1031 = vmatprep.subr.bf16.mxu0 0
        %1032 = vmatpush1.bf16.msra.mxu0 0
        %1033 = vmatprep.subr.bf16.mxu0 0
        %1034 = vmatpush1.bf16.msra.mxu0 %v1014
        %1035 = vmatprep.subr.bf16.mxu0 0
        %1036 = vmatpush2.bf16.msra.mxu0 0
        %1037 = vmatprep.subr.bf16.mxu0 0
        %1038 = vmatpush2.bf16.msra.mxu0 0
        %1039 = vmatprep.subr.bf16.mxu0 0
        %1040 = vmatpush2.bf16.msra.mxu0 0
        %1041 = vmatprep.subr.bf16.mxu0 0
        %1042 = vmatpush2.bf16.msra.mxu0 0
        %1043 = vmatprep.subr.bf16.mxu0 0
        %1044 = vmatpush2.bf16.msra.mxu0 0
        %1045 = vmatprep.subr.bf16.mxu0 0
        %1046 = vmatpush2.bf16.msra.mxu0 0
        %1047 = vmatprep.subr.bf16.mxu0 0
        %1048 = vmatpush2.bf16.msra.mxu0 0
        %1049 = vmatprep.subr.bf16.mxu0 0
        %1050 = vmatpush2.bf16.msra.mxu0 0
        %1051 = vmatprep.mubr.bf16.mxu0 0
        %1052 = vmatmul.mubr.bf16.gmra.mxu0 %v1017
        %v1053 = vpop.f32.mrf.mxu0
        %v1054 = vadd.f32 0.0, %v1053
        %v1055 = vpop.f32.mrf.mxu0
        %v1056 = vpop.f32.mrf.mxu0
        %v1057 = vadd.f32 0.0, %v1056
        %v1058 = vpop.f32.mrf.mxu0
        %1059 = vdwg.mxu0
        %1062 = vrot.lane.b32.xlu0 %v1054, 16
        %v1063 = vpop.permute.xlu0 %1062
        %1064 = vrot.lane.b32.xlu0 %v1057, 16
        %v1065 = vpop.permute.xlu0 %1064
        %v1068 = vsel %vm818, %v930, %v1063
        %v1069 = vsel %vm818, %v933, %v1065
        %v1070 = vpack.c.bf16 %v1069, %v1068
        %v1071 = vld [vmem:[%s8] sm:$0xf]
        %v1072 = vld [vmem:[%s8 + $0x4] sm:$0xf]
        %v1073 = vld [vmem:[%s8 + $0x8] sm:$0xf]
        %v1074 = vld [vmem:[%s8 + $0xc] sm:$0xf]
        %v1079 = vunpack.c.l.b16 %v1071
        %v1080 = vunpack.c.l.b16 %v1072
        %v1081 = vunpack.c.l.b16 %v1073
        %v1082 = vunpack.c.l.b16 %v1074
        %v1083 = vpack.c.b16 %v1080, %v1079
        %v1084 = vpack.c.b16 %v1082, %v1081
        %v1088 = vsel %vm700, %v1070, 0
        %1090 = vmatprep.subr.bf16.mxu0 0
        %1091 = vmatpush1.bf16.msra.mxu0 0
        %1092 = vmatprep.subr.bf16.mxu0 0
        %1093 = vmatpush1.bf16.msra.mxu0 0
        %1094 = vmatprep.subr.bf16.mxu0 0
        %1095 = vmatpush1.bf16.msra.mxu0 0
        %1096 = vmatprep.subr.bf16.mxu0 0
        %1097 = vmatpush1.bf16.msra.mxu0 0
        %1098 = vmatprep.subr.bf16.mxu0 0
        %1099 = vmatpush1.bf16.msra.mxu0 0
        %1100 = vmatprep.subr.bf16.mxu0 0
        %1101 = vmatpush1.bf16.msra.mxu0 0
        %1102 = vmatprep.subr.bf16.mxu0 0
        %1103 = vmatpush1.bf16.msra.mxu0 %v1084
        %1104 = vmatprep.subr.bf16.mxu0 0
        %1105 = vmatpush1.bf16.msra.mxu0 %v1083
        %1106 = vmatprep.subr.bf16.mxu0 0
        %1107 = vmatpush2.bf16.msra.mxu0 0
        %1108 = vmatprep.subr.bf16.mxu0 0
        %1109 = vmatpush2.bf16.msra.mxu0 0
        %1110 = vmatprep.subr.bf16.mxu0 0
        %1111 = vmatpush2.bf16.msra.mxu0 0
        %1112 = vmatprep.subr.bf16.mxu0 0
        %1113 = vmatpush2.bf16.msra.mxu0 0
        %1114 = vmatprep.subr.bf16.mxu0 0
        %1115 = vmatpush2.bf16.msra.mxu0 0
        %1116 = vmatprep.subr.bf16.mxu0 0
        %1117 = vmatpush2.bf16.msra.mxu0 0
        %1118 = vmatprep.subr.bf16.mxu0 0
        %1119 = vmatpush2.bf16.msra.mxu0 0
        %1120 = vmatprep.subr.bf16.mxu0 0
        %1121 = vmatpush2.bf16.msra.mxu0 0
        %1122 = vmatprep.mubr.bf16.mxu0 0
        %1123 = vmatmul.mubr.bf16.gmra.mxu0 %v1088
        %v1124 = vpop.f32.mrf.mxu0
        %v1125 = vadd.f32 0.0, %v1124
        %v1126 = vpop.f32.mrf.mxu0
        %v1127 = vpop.f32.mrf.mxu0
        %v1128 = vadd.f32 0.0, %v1127
        %v1129 = vpop.f32.mrf.mxu0
        %1130 = vdwg.mxu0
        %v1131 = vadd.f32 %v692, %v1125
        %v1132 = vadd.f32 %v695, %v1128
        %v1133 = vld [vmem:[%s9] sm:$0x1]
        %v1135 = vlaneseq
        %v1136 = vshrl.u32 %v1135, 7
        %v1137 = vsub.s32 0, %v1136
        %v1138 = vrot.slane %v1133, %v1137
        %v1140 = vadd.f32 %v1131, %v1138
        %v1141 = vadd.f32 %v1132, %v1138
        %v1142 = vld [vmem:[%s10] sm:$0x1]
        %v1143 = vld [vmem:[%s11] sm:$0x1]
        %v1144 = vsel %vm700, %v1140, 0.0
        %1145 = vadd.xlane.f32.xlu0 %v1144
        %v1146 = vpop.xlane.xlu0 %1145
        %v1147 = vsel %vm700, %v1141, 0.0
        %1148 = vadd.xlane.f32.xlu0 %v1147
        %v1149 = vpop.xlane.xlu0 %1148
        %v1150 = vmul.f32 %v1146, %v707
        %v1151 = vmul.f32 %v1149, %v707
        %v1152 = vsub.f32 %v1140, %v1150
        %v1153 = vsub.f32 %v1141, %v1151
        %v1154 = vmul.f32 %v1152, %v1152
        %v1155 = vmul.f32 %v1153, %v1153
        %v1156 = vsel %vm700, %v1154, 0.0
        %1157 = vadd.xlane.f32.xlu0 %v1156
        %v1158 = vpop.xlane.xlu0 %1157
        %v1159 = vsel %vm700, %v1155, 0.0
        %1160 = vadd.xlane.f32.xlu0 %v1159
        %v1161 = vpop.xlane.xlu0 %1160
        %v1162 = vmul.f32 %v1158, %v707
        %v1163 = vmul.f32 %v1161, %v707
        %v1164 = vadd.f32 %v1162, 1e-05
        %v1165 = vadd.f32 %v1163, 1e-05
        %v1166 = vrsqrt.pop %v1164
        %v1167 = vrsqrt.pop %v1165
        %v1168 = vmul.f32 %v1152, %v1166
        %v1169 = vmul.f32 %v1153, %v1167
        %v1171 = vlaneseq
        %v1172 = vshrl.u32 %v1171, 7
        %v1173 = vsub.s32 0, %v1172
        %v1174 = vrot.slane %v1142, %v1173
        %v1176 = vmul.f32 %v1168, %v1174
        %v1177 = vmul.f32 %v1169, %v1174
        %v1179 = vlaneseq
        %v1180 = vshrl.u32 %v1179, 7
        %v1181 = vsub.s32 0, %v1180
        %v1182 = vrot.slane %v1143, %v1181
        %v1184 = vadd.f32 %v1176, %v1182
        %v1185 = vadd.f32 %v1177, %v1182
        %v1186 = vpack.c.bf16 %v1185, %v1184
        %v1187 = vld [vmem:[%s12] sm:$0xf]
        %v1188 = vld [vmem:[%s12 + $0x4] sm:$0xf]
        %v1189 = vld [vmem:[%s12 + $0x8] sm:$0xf]
        %v1190 = vld [vmem:[%s12 + $0xc] sm:$0xf]
        %v1191 = vld [vmem:[%s13] sm:$0x1]
        %v1193 = vlaneseq
        %v1194 = vshrl.u32 %v1193, 7
        %v1195 = vsub.s32 0, %v1194
        %v1196 = vrot.slane %v1191, %v1195
        %v1202 = vunpack.c.l.b16 %v1187
        %v1203 = vunpack.c.l.b16 %v1188
        %v1204 = vunpack.c.l.b16 %v1189
        %v1205 = vunpack.c.l.b16 %v1190
        %v1206 = vpack.c.b16 %v1203, %v1202
        %v1207 = vpack.c.b16 %v1205, %v1204
        %v1211 = vsel %vm700, %v1186, 0
        %1213 = vmatprep.subr.bf16.mxu0 0
        %1214 = vmatpush1.bf16.msra.mxu0 0
        %1215 = vmatprep.subr.bf16.mxu0 0
        %1216 = vmatpush1.bf16.msra.mxu0 0
        %1217 = vmatprep.subr.bf16.mxu0 0
        %1218 = vmatpush1.bf16.msra.mxu0 0
        %1219 = vmatprep.subr.bf16.mxu0 0
        %1220 = vmatpush1.bf16.msra.mxu0 0
        %1221 = vmatprep.subr.bf16.mxu0 0
        %1222 = vmatpush1.bf16.msra.mxu0 0
        %1223 = vmatprep.subr.bf16.mxu0 0
        %1224 = vmatpush1.bf16.msra.mxu0 0
        %1225 = vmatprep.subr.bf16.mxu0 0
        %1226 = vmatpush1.bf16.msra.mxu0 %v1207
        %1227 = vmatprep.subr.bf16.mxu0 0
        %1228 = vmatpush1.bf16.msra.mxu0 %v1206
        %1229 = vmatprep.subr.bf16.mxu0 0
        %1230 = vmatpush2.bf16.msra.mxu0 0
        %1231 = vmatprep.subr.bf16.mxu0 0
        %1232 = vmatpush2.bf16.msra.mxu0 0
        %1233 = vmatprep.subr.bf16.mxu0 0
        %1234 = vmatpush2.bf16.msra.mxu0 0
        %1235 = vmatprep.subr.bf16.mxu0 0
        %1236 = vmatpush2.bf16.msra.mxu0 0
        %1237 = vmatprep.subr.bf16.mxu0 0
        %1238 = vmatpush2.bf16.msra.mxu0 0
        %1239 = vmatprep.subr.bf16.mxu0 0
        %1240 = vmatpush2.bf16.msra.mxu0 0
        %1241 = vmatprep.subr.bf16.mxu0 0
        %1242 = vmatpush2.bf16.msra.mxu0 0
        %1243 = vmatprep.subr.bf16.mxu0 0
        %1244 = vmatpush2.bf16.msra.mxu0 0
        %1245 = vmatprep.mubr.bf16.mxu0 0
        %1246 = vmatmul.mubr.bf16.gmra.mxu0 %v1211
        %v1247 = vpop.f32.mrf.mxu0
        %v1248 = vadd.f32 %v1196, %v1247
        %v1249 = vpop.f32.mrf.mxu0
        %v1250 = vpop.f32.mrf.mxu0
        %v1251 = vadd.f32 %v1196, %v1250
        %v1252 = vpop.f32.mrf.mxu0
        %1253 = vdwg.mxu0
        %v1254 = vmul.f32 %v1248, %v1248
        %v1255 = vmul.f32 %v1251, %v1251
        %v1256 = vmul.f32 %v1248, %v1254
        %v1257 = vmul.f32 %v1251, %v1255
        %v1258 = vmul.f32 %v1256, 0.044715
        %v1259 = vmul.f32 %v1257, 0.044715
        %v1260 = vadd.f32 %v1248, %v1258
        %v1261 = vadd.f32 %v1251, %v1259
        %v1262 = vmul.f32 %v1260, 0.7978846
        %v1263 = vmul.f32 %v1261, 0.7978846
        %v1264 = vtanh.pop %v1262
        %v1265 = vtanh.pop %v1263
        %v1266 = vadd.f32 %v1264, 1.0
        %v1267 = vadd.f32 %v1265, 1.0
        %v1268 = vmul.f32 %v1266, 0.5
        %v1269 = vmul.f32 %v1267, 0.5
        %v1270 = vmul.f32 %v1248, %v1268
        %v1271 = vmul.f32 %v1251, %v1269
        %v1272 = vpack.c.bf16 %v1271, %v1270
        %v1273 = vld [vmem:[%s14] sm:$0xf]
        %v1274 = vld [vmem:[%s14 + $0x4] sm:$0xf]
        %v1275 = vld [vmem:[%s14 + $0x8] sm:$0xf]
        %v1276 = vld [vmem:[%s14 + $0xc] sm:$0xf]
        %v1277 = vld [vmem:[%s14 + $0x10] sm:$0xf]
        %v1278 = vld [vmem:[%s14 + $0x14] sm:$0xf]
        %v1279 = vld [vmem:[%s14 + $0x18] sm:$0xf]
        %v1280 = vld [vmem:[%s14 + $0x1c] sm:$0xf]
        %v1281 = vld [vmem:[%s14 + $0x20] sm:$0xf]
        %v1282 = vld [vmem:[%s14 + $0x24] sm:$0xf]
        %v1283 = vld [vmem:[%s14 + $0x28] sm:$0xf]
        %v1284 = vld [vmem:[%s14 + $0x2c] sm:$0xf]
        %v1285 = vld [vmem:[%s14 + $0x30] sm:$0xf]
        %v1286 = vld [vmem:[%s14 + $0x34] sm:$0xf]
        %v1287 = vld [vmem:[%s14 + $0x38] sm:$0xf]
        %v1288 = vld [vmem:[%s14 + $0x3c] sm:$0xf]
        %v1305 = vunpack.c.l.b16 %v1273
        %v1306 = vunpack.c.l.b16 %v1274
        %v1307 = vunpack.c.l.b16 %v1275
        %v1308 = vunpack.c.l.b16 %v1276
        %v1309 = vunpack.c.l.b16 %v1277
        %v1310 = vunpack.c.l.b16 %v1278
        %v1311 = vunpack.c.l.b16 %v1279
        %v1312 = vunpack.c.l.b16 %v1280
        %v1313 = vunpack.c.l.b16 %v1281
        %v1314 = vunpack.c.l.b16 %v1282
        %v1315 = vunpack.c.l.b16 %v1283
        %v1316 = vunpack.c.l.b16 %v1284
        %v1317 = vunpack.c.l.b16 %v1285
        %v1318 = vunpack.c.l.b16 %v1286
        %v1319 = vunpack.c.l.b16 %v1287
        %v1320 = vunpack.c.l.b16 %v1288
        %v1321 = vpack.c.b16 %v1306, %v1305
        %v1322 = vpack.c.b16 %v1308, %v1307
        %v1323 = vpack.c.b16 %v1310, %v1309
        %v1324 = vpack.c.b16 %v1312, %v1311
        %v1325 = vpack.c.b16 %v1314, %v1313
        %v1326 = vpack.c.b16 %v1316, %v1315
        %v1327 = vpack.c.b16 %v1318, %v1317
        %v1328 = vpack.c.b16 %v1320, %v1319
        %1337 = vmatprep.subr.bf16.mxu0 0
        %1338 = vmatpush1.bf16.msra.mxu0 %v1328
        %1339 = vmatprep.subr.bf16.mxu0 0
        %1340 = vmatpush1.bf16.msra.mxu0 %v1327
        %1341 = vmatprep.subr.bf16.mxu0 0
        %1342 = vmatpush1.bf16.msra.mxu0 %v1326
        %1343 = vmatprep.subr.bf16.mxu0 0
        %1344 = vmatpush1.bf16.msra.mxu0 %v1325
        %1345 = vmatprep.subr.bf16.mxu0 0
        %1346 = vmatpush1.bf16.msra.mxu0 %v1324
        %1347 = vmatprep.subr.bf16.mxu0 0
        %1348 = vmatpush1.bf16.msra.mxu0 %v1323
        %1349 = vmatprep.subr.bf16.mxu0 0
        %1350 = vmatpush1.bf16.msra.mxu0 %v1322
        %1351 = vmatprep.subr.bf16.mxu0 0
        %1352 = vmatpush1.bf16.msra.mxu0 %v1321
        %1353 = vmatprep.subr.bf16.mxu0 0
        %1354 = vmatpush2.bf16.msra.mxu0 0
        %1355 = vmatprep.subr.bf16.mxu0 0
        %1356 = vmatpush2.bf16.msra.mxu0 0
        %1357 = vmatprep.subr.bf16.mxu0 0
        %1358 = vmatpush2.bf16.msra.mxu0 0
        %1359 = vmatprep.subr.bf16.mxu0 0
        %1360 = vmatpush2.bf16.msra.mxu0 0
        %1361 = vmatprep.subr.bf16.mxu0 0
        %1362 = vmatpush2.bf16.msra.mxu0 0
        %1363 = vmatprep.subr.bf16.mxu0 0
        %1364 = vmatpush2.bf16.msra.mxu0 0
        %1365 = vmatprep.subr.bf16.mxu0 0
        %1366 = vmatpush2.bf16.msra.mxu0 0
        %1367 = vmatprep.subr.bf16.mxu0 0
        %1368 = vmatpush2.bf16.msra.mxu0 0
        %1369 = vmatprep.mubr.bf16.mxu0 0
        %1370 = vmatmul.mubr.bf16.gmra.mxu0 %v1272
        %v1371 = vpop.f32.mrf.mxu0
        %v1372 = vadd.f32 0.0, %v1371
        %v1373 = vpop.f32.mrf.mxu0
        %v1374 = vpop.f32.mrf.mxu0
        %v1375 = vadd.f32 0.0, %v1374
        %v1376 = vpop.f32.mrf.mxu0
        %1377 = vdwg.mxu0
        %v1378 = vadd.f32 %v1140, %v1372
        %v1379 = vadd.f32 %v1141, %v1375
        %v1380 = vld [vmem:[%s15] sm:$0x1]
        %v1382 = vlaneseq
        %v1383 = vshrl.u32 %v1382, 7
        %v1384 = vsub.s32 0, %v1383
        %v1385 = vrot.slane %v1380, %v1384
        %v1387 = vadd.f32 %v1378, %v1385
        %v1388 = vadd.f32 %v1379, %v1385
        %v1389 = vld [vmem:[%s16] sm:$0x1]
        %v1390 = vld [vmem:[%s17] sm:$0x1]
        %v1391 = vsel %vm700, %v1387, 0.0
        %1392 = vadd.xlane.f32.xlu0 %v1391
        %v1393 = vpop.xlane.xlu0 %1392
        %v1394 = vsel %vm700, %v1388, 0.0
        %1395 = vadd.xlane.f32.xlu0 %v1394
        %v1396 = vpop.xlane.xlu0 %1395
        %v1397 = vmul.f32 %v1393, %v707
        %v1398 = vmul.f32 %v1396, %v707
        %v1399 = vsub.f32 %v1387, %v1397
        %v1400 = vsub.f32 %v1388, %v1398
        %v1401 = vmul.f32 %v1399, %v1399
        %v1402 = vmul.f32 %v1400, %v1400
        %v1403 = vsel %vm700, %v1401, 0.0
        %1404 = vadd.xlane.f32.xlu0 %v1403
        %v1405 = vpop.xlane.xlu0 %1404
        %v1406 = vsel %vm700, %v1402, 0.0
        %1407 = vadd.xlane.f32.xlu0 %v1406
        %v1408 = vpop.xlane.xlu0 %1407
        %v1409 = vmul.f32 %v1405, %v707
        %v1410 = vmul.f32 %v1408, %v707
        %v1411 = vadd.f32 %v1409, 1e-05
        %v1412 = vadd.f32 %v1410, 1e-05
        %v1413 = vrsqrt.pop %v1411
        %v1414 = vrsqrt.pop %v1412
        %v1415 = vmul.f32 %v1399, %v1413
        %v1416 = vmul.f32 %v1400, %v1414
        %v1418 = vlaneseq
        %v1419 = vshrl.u32 %v1418, 7
        %v1420 = vsub.s32 0, %v1419
        %v1421 = vrot.slane %v1389, %v1420
        %v1423 = vmul.f32 %v1415, %v1421
        %v1424 = vmul.f32 %v1416, %v1421
        %v1426 = vlaneseq
        %v1427 = vshrl.u32 %v1426, 7
        %v1428 = vsub.s32 0, %v1427
        %v1429 = vrot.slane %v1390, %v1428
        %v1431 = vadd.f32 %v1423, %v1429
        %v1432 = vadd.f32 %v1424, %v1429
        %1433 = vst.msk [vmem:[%s600] sm:$0xff] %vm700, %v1431
        %1434 = vst.msk [vmem:[%s600 + $0x8] sm:$0xff] %vm700, %v1432
        %v1435 = vsel %vm700, %v1431, 0.0
        %v1436 = vsel %vm700, %v1432, 0.0
        %v1437 = vadd.f32 %v1435, %v1436
        %v1438 = vrot.slane %v1437, 4
        %v1439 = vadd.f32 %v1437, %v1438
        %v1440 = vrot.slane %v1439, 2
        %v1441 = vadd.f32 %v1439, %v1440
        %v1442 = vrot.slane %v1441, 1
        %v1443 = vadd.f32 %v1441, %v1442
        %v1444 = vrcp.pop 16.0
        %v1445 = vmul.f32 %v1443, %v1444
        %vm1446 = vcmask 253952
        %1447 = vst.msk [vmem:[%s606] sm:$0x1] %vm1446, %v1445
        %s1448 = sand.u32 %s428, 1
        %s1449 = scalar_lea.sflag [#allocation3], %s1448
        %s1450 = sand.u32 %s428, 1
        %s1451 = smul.addr %s1450, 16
        %s1452 = scalar_lea.vmem [#allocation2], %s1451
        %s1453 = sand.u32 %s454, 1
        %s1454 = scalar_lea.sflag [#allocation5], %s1453
        %s1455 = sand.u32 %s454, 1
        %s1456 = scalar_lea.vmem [#allocation4], %s1455
        // Predicated region
        $region93: #{swin_vision_forward.1} parent=91 // pred_check
          %p1457 = pneg %p438
        $region94: #{swin_vision_forward.1} parent=91 // pred_check_branch
          %1459 = sbr.rel (%p1457) target = $region96
        $region95: #{swin_vision_forward.1} parent=91 // pred_region
          %s1460 = smul.u32 2, %s37
          %s1462 = ssub.s32 256, 256
          %1463 = vsyncadd %s1449, %s1462
          %s1464 = smul.addr %s1460, 128
          %s1465 = scalar_lea.hbm %s18, %s1464
          %s1466 = sshll.u32 %s1452, 4
          %s1467 = int_to_ptr.vmem [resolvable:$true] %s1466
          %1472 = dma.vmem_to_hbm [thread:$0]  %s1467, 256, %s1465, %s1449, 128, 128, 8
        $region96: #{swin_vision_forward.1} parent=91 // pred_fallthru
          _
        // Predicated region
        $region97: #{swin_vision_forward.1} parent=91 // pred_check
          %p1473 = pneg %p464
        $region98: #{swin_vision_forward.1} parent=91 // pred_check_branch
          %1475 = sbr.rel (%p1473) target = $region100
        $region99: #{swin_vision_forward.1} parent=91 // pred_region
          %s1477 = ssub.s32 16, 16
          %1478 = vsyncadd %s1454, %s1477
          %s1479 = smul.addr %s37, 16
          %s1480 = scalar_lea.hbm %s19, %s1479
          %s1482 = sshll.u32 %s1456, 4
          %s1483 = int_to_ptr.vmem [resolvable:$true] %s1482
          %1485 = dma.vmem_to_hbm [thread:$0]  %s1483, 16, %s1480, %s1454
        $region100: #{swin_vision_forward.1} parent=91 // pred_fallthru
          _
      $region92: #{swin_vision_forward.1} parent=5 // pred_fallthru
        _
      %p1486 = scmp.le.s32.totalorder 2, %s32
      // Predicated region
      $region101: #{swin_vision_forward.1} parent=5 // pred_check
        %p1487 = pneg %p1486
      $region102: #{swin_vision_forward.1} parent=5 // pred_check_branch
        %1489 = sbr.rel (%p1487) target = $region104
      $region103: #{swin_vision_forward.1} parent=5 // pred_region
        %s1490 = ssub.s32 %s32, 2
        // Predicated region
        $region105: #{swin_vision_forward.1} parent=103 // pred_check
          %p1491 = pneg %p444
        $region106: #{swin_vision_forward.1} parent=103 // pred_check_branch
          %1493 = sbr.rel (%p1491) target = $region108
        $region107: #{swin_vision_forward.1} parent=103 // pred_region
          %s1494 = sand.u32 %s429, 1
          %s1495 = scalar_lea.sflag [#allocation3], %s1494
          %s1496 = sand.u32 %s429, 1
          %s1497 = smul.addr %s1496, 16
          %s1498 = scalar_lea.vmem [#allocation2], %s1497
          %1499 = dma.done %s1495, 256
        $region108: #{swin_vision_forward.1} parent=103 // pred_fallthru
          _
        // Predicated region
        $region109: #{swin_vision_forward.1} parent=103 // pred_check
          %p1500 = pneg %p470
        $region110: #{swin_vision_forward.1} parent=103 // pred_check_branch
          %1502 = sbr.rel (%p1500) target = $region112
        $region111: #{swin_vision_forward.1} parent=103 // pred_region
          %s1503 = sand.u32 %s455, 1
          %s1504 = scalar_lea.sflag [#allocation5], %s1503
          %s1505 = sand.u32 %s455, 1
          %s1506 = scalar_lea.vmem [#allocation4], %s1505
          %1507 = dma.done %s1504, 16
        $region112: #{swin_vision_forward.1} parent=103 // pred_fallthru
          _
      $region104: #{swin_vision_forward.1} parent=5 // pred_fallthru
        _
    $region6: #{swin_vision_forward.1} parent=1 // loop_footer
      %s36 = sadd.s32 1, %s32
    $region7: #{swin_vision_forward.1} parent=1 // loop_footer_branch
      %31 = sbr.rel target = $region3
    $region8: #{swin_vision_forward.1} parent=1 // loop_exit
      _
    %1508 = vsyncpa [#allocation3], 1
    %s1509 = scalar_lea.sflag [#allocation3], 1
    %1510 = vsyncpa %s1509, 1
    %1511 = vsyncpa [#allocation5], 1
    %s1512 = scalar_lea.sflag [#allocation5], 1
    %1513 = vsyncpa %s1512, 1

</llo_original>
